<compile_context>
chip_gen: v7x
topology: tpu7x:2x2x1
jax: 0.10.0
libtpu: 0.0.40
codegen_flags: <defaults>
</compile_context>

<pallas_src>
import functools
import math

import jax
import jax.numpy as jnp
from jax import lax
from jax.experimental import pallas as pl
from jax.experimental.pallas import tpu as pltpu


USE_BF16 = True  # bf16 MXU inputs / f32 accumulation (set False for full f32)


def _round_up(x, m):
    return ((x + m - 1) // m) * m


# ---------------------------------------------------------------------------
# Plain-JAX glue: FPS, gather, ball query
# ---------------------------------------------------------------------------
def farthest_point_sample(xyz, npoint, key):
    """xyz: [B, N, 3] -> centroids idx [B, npoint] (int32)."""
    B, N, _ = xyz.shape
    farthest = jax.random.randint(key, (B,), 0, N, dtype=jnp.int32)
    distance = jnp.full((B, N), 1e10, dtype=jnp.float32)
    centroids = jnp.zeros((B, npoint), dtype=jnp.int32)

    def body(i, carry):
        centroids, distance, farthest = carry
        centroids = centroids.at[:, i].set(farthest)
        centroid = jnp.take_along_axis(xyz, farthest[:, None, None], axis=1)  # [B,1,3]
        dist = jnp.sum((xyz - centroid) ** 2, axis=-1)                        # [B,N]
        distance = jnp.minimum(distance, dist)
        farthest = jnp.argmax(distance, axis=-1).astype(jnp.int32)
        return centroids, distance, farthest

    centroids, _, _ = lax.fori_loop(0, npoint, body, (centroids, distance, farthest))
    return centroids


def index_points(points, idx):
    """points: [B, N, C], idx: [B, ...] -> [B, ..., C]."""
    B = points.shape[0]
    C = points.shape[-1]
    flat_idx = idx.reshape(B, -1)                                  # [B, M]
    gathered = jnp.take_along_axis(points, flat_idx[..., None], axis=1)
    return gathered.reshape(*idx.shape, C)


def query_ball_point(radius, nsample, xyz, new_xyz):
    """xyz: [B, N, 3], new_xyz: [B, S, 3] -> idx [B, S, nsample] (int32)."""
    B, N, _ = xyz.shape
    S = new_xyz.shape[1]
    # ||a-b||^2 = ||a||^2 + ||b||^2 - 2 a.b  -- avoids the [B,S,N,3] intermediate.
    sqrdists = (jnp.sum(new_xyz * new_xyz, axis=-1)[:, :, None]
                + jnp.sum(xyz * xyz, axis=-1)[:, None, :]
                - 2.0 * jnp.einsum("bsc,bnc->bsn", new_xyz, xyz,
                                   precision=lax.Precision.HIGHEST))
    idx = jnp.broadcast_to(jnp.arange(N, dtype=jnp.int32), (B, S, N))
    idx = jnp.where(sqrdists < radius * radius, idx, N)
    # first-K in-radius neighbours in point order == the K smallest indices
    # (top_k on the negated indices; avoids a full sort along N).
    neg_topk, _ = lax.top_k(-idx, nsample)
    group_idx = -neg_topk                                           # ascending
    # pytorch3d pads with -1; torch advanced indexing with -1 wraps to last point.
    group_idx = jnp.where(group_idx == N, N - 1, group_idx)
    return group_idx


# ---------------------------------------------------------------------------
# Pallas kernel: per-scale MLP (1x1 conv = matmul) + folded bias/BN + ReLU + max_K
# ---------------------------------------------------------------------------
def _make_msg_mlp_kernel(num_layers, nsample, compute_dtype):
    def kernel(x_ref, *rest):
        L = num_layers
        w_refs = rest[:L]
        c_refs = rest[L:2 * L]
        out_ref = rest[2 * L]

        h = x_ref[...]                                        # (tg*K, Cin)
        for j in range(L):
            acc = jnp.dot(h.astype(compute_dtype), w_refs[j][...],
                          preferred_element_type=jnp.float32)  # MXU, f32 acc
            h = jnp.maximum(acc + c_refs[j][...], 0.0)         # folded bias+BN, ReLU
        rows, cpad = h.shape
        # Tile-aligned sublane split (K rows per group), then max over K.
        out_ref[...] = jnp.max(h.reshape(rows // nsample, nsample, cpad), axis=1)

    return kernel


def _choose_group_tile(G, K, Cin, Cpad, in_itemsize):
    """Pick the group-tile tg: big enough to amortize per-step overhead and fill
    the MXU M-dim, small enough to double-buffer on every TPU generation."""
    # Keep tg a multiple of 8 and tg*K a multiple of 128 (full MXU passes).
    step = max(8, 128 // math.gcd(K, 128))
    target_rows = 2048                       # ~2k matmul rows per grid step
    tg = _round_up(max(target_rows // K, 1), step)
    cin_vmem = _round_up(Cin, 128)           # lane padding in VMEM
    budget = 8 << 20                         # per-step double-buffered working set

    def working_set(t):
        return 2 * (t * K * cin_vmem * in_itemsize + t * Cpad * 4)

    while tg > step and working_set(tg) > budget:
        tg -= step
    tg = min(tg, _round_up(G, step))         # never bigger than (padded) problem
    tg = max(tg, step)
    return tg, working_set(tg)


def run_scale_mlp(grouped, weights, biases, scales, shifts):
    """grouped: [G, K, Cin] f32 -> [G, Cout] f32 via the Pallas kernel."""
    G, K, Cin = grouped.shape
    L = len(weights)
    compute_dtype = jnp.bfloat16 if USE_BF16 else jnp.float32

    # Fold conv bias + eval-mode BN into the weights: layer == relu(x @ W' + c).
    ws, cs = [], []
    for w, b, s, t in zip(weights, biases, scales, shifts):
        ws.append((w * s).astype(compute_dtype))          # W' = W * scale
        cs.append((b * s + t).astype(jnp.float32))        # c  = b*scale + shift

    Cout = weights[-1].shape[1]
    Cpad = _round_up(Cout, 128)                           # lane-dense output stores
    if Cpad != Cout:
        ws[-1] = jnp.pad(ws[-1], ((0, 0), (0, Cpad - Cout)))
        cs[-1] = jnp.pad(cs[-1], ((0, 0), (0, Cpad - Cout)))

    itemsize = jnp.dtype(compute_dtype).itemsize
    tg, blk_bytes = _choose_group_tile(G, K, Cin, Cpad, itemsize)
    G_pad = _round_up(G, tg)

    # Wrapper-side flatten to 2-D (no in-kernel input reshape) + group padding.
    x = grouped.reshape(G * K, Cin).astype(compute_dtype)
    if G_pad != G:
        x = jnp.pad(x, ((0, (G_pad - G) * K), (0, 0)))

    in_specs = [pl.BlockSpec((tg * K, Cin), lambda g: (g, 0))]
    in_specs += [pl.BlockSpec(w.shape, lambda g: (0, 0)) for w in ws]
    in_specs += [pl.BlockSpec(c.shape, lambda g: (0, 0)) for c in cs]

    param_bytes = sum(int(a.size) * a.dtype.itemsize for a in (*ws, *cs))
    need = blk_bytes + 2 * param_bytes + (2 << 20)
    vmem_limit = int(min(48 << 20, max(32 << 20, 2 * need)))  # safe on v5e/v6e/v7x

    out = pl.pallas_call(
        _make_msg_mlp_kernel(L, K, compute_dtype),
        out_shape=jax.ShapeDtypeStruct((G_pad, Cpad), jnp.float32),
        grid=(G_pad // tg,),
        in_specs=in_specs,
        out_specs=pl.BlockSpec((tg, Cpad), lambda g: (g, 0)),
        compiler_params=pltpu.CompilerParams(
            dimension_semantics=("parallel",),
            vmem_limit_bytes=vmem_limit),
    )(x, *ws, *cs)
    return out[:G, :Cout]


# ---------------------------------------------------------------------------
# Module: parameter init + forward
# ---------------------------------------------------------------------------
def init_params(in_channel, mlp_list, key):
    """Deterministic parameter init (Conv2d 1x1 weights/bias + folded eval BN)."""
    params = []
    eps = 1e-5
    for i, mlp in enumerate(mlp_list):
        ws, bs, ss, ts = [], [], [], []
        last = in_channel + 3
        for j, out_c in enumerate(mlp):
            kw, kb, kg, kbe = jax.random.split(jax.random.fold_in(key, i * 97 + j), 4)
            w = jax.random.normal(kw, (last, out_c), jnp.float32) / jnp.sqrt(float(last))
            b = 0.1 * jax.random.normal(kb, (1, out_c), jnp.float32)
            gamma = 1.0 + 0.1 * jax.random.normal(kg, (1, out_c), jnp.float32)
            beta = 0.1 * jax.random.normal(kbe, (1, out_c), jnp.float32)
            running_mean = jnp.zeros((1, out_c), jnp.float32)
            running_var = jnp.ones((1, out_c), jnp.float32)
            scale = gamma / jnp.sqrt(running_var + eps)
            shift = beta - running_mean * scale
            ws.append(w); bs.append(b); ss.append(scale); ts.append(shift)
            last = out_c
        params.append((ws, bs, ss, ts))
    return params


@functools.partial(jax.jit, static_argnames=("npoint", "radius_list", "nsample_list"))
def pointnet_sa_msg_forward(xyz_bcn, points_bdn, params, fps_key, *,
                            npoint, radius_list, nsample_list):
    """
    xyz_bcn:    [B, 3, N]   (PyTorch convention)
    points_bdn: [B, D, N]
    returns new_xyz [B, 3, S], new_points_concat [B, sum(Cout_i), S]
    """
    xyz = jnp.transpose(xyz_bcn, (0, 2, 1))                 # [B, N, 3]
    points = jnp.transpose(points_bdn, (0, 2, 1)) if points_bdn is not None else None
    B, N, _ = xyz.shape
    S = npoint

    fps_idx = farthest_point_sample(xyz, S, fps_key)        # [B, S]
    new_xyz = index_points(xyz, fps_idx)                    # [B, S, 3]

    new_points_list = []
    for i, radius in enumerate(radius_list):
        K = nsample_list[i]
        group_idx = query_ball_point(radius, K, xyz, new_xyz)          # [B,S,K]
        # TODO(synk): the neighbor gather could move into the kernel via
        # PrefetchScalarGridSpec + manual DMA to avoid materializing the
        # [B,S,K,Cin] tensor in HBM; kept in XLA for now.
        grouped_xyz = index_points(xyz, group_idx)                     # [B,S,K,3]
        grouped_xyz = grouped_xyz - new_xyz[:, :, None, :]
        if points is not None:
            grouped_points = index_points(points, group_idx)           # [B,S,K,D]
            grouped_points = jnp.concatenate([grouped_points, grouped_xyz], axis=-1)
        else:
            grouped_points = grouped_xyz
        Cin = grouped_points.shape[-1]
        g = grouped_points.reshape(B * S, K, Cin)                      # kernel layout

        ws, bs, ss, ts = params[i]
        out = run_scale_mlp(g, ws, bs, ss, ts)                         # [B*S, Cout]
        Cout = out.shape[-1]
        new_points_list.append(out.reshape(B, S, Cout).transpose(0, 2, 1))  # [B,Cout,S]

    new_xyz_out = jnp.transpose(new_xyz, (0, 2, 1))                    # [B, 3, S]
    new_points_concat = jnp.concatenate(new_points_list, axis=1)       # [B, sumC, S]
    return new_xyz_out, new_points_concat


# ---------------------------------------------------------------------------
if __name__ == "__main__":
    # Module config (small, consistent with the reference module)
    npoint = 16
    radius_list = (0.4, 0.8)
    nsample_list = (8, 16)
    in_channel = 4
    mlp_list = [[16, 32], [16, 32, 64]]

    B, N, D = 2, 64, in_channel

    key = jax.random.PRNGKey(0)
    k_xyz, k_pts, k_fps, k_par = jax.random.split(key, 4)
    xyz = jax.random.normal(k_xyz, (B, 3, N), jnp.float32)      # [B, C=3, N]
    points = jax.random.normal(k_pts, (B, D, N), jnp.float32)   # [B, D, N]

    params = init_params(in_channel, mlp_list, k_par)

    new_xyz, new_points = pointnet_sa_msg_forward(
        xyz, points, params, k_fps,
        npoint=npoint, radius_list=radius_list, nsample_list=nsample_list)
    jax.block_until_ready((new_xyz, new_points))

    assert new_xyz.shape == (B, 3, npoint)
    assert new_points.shape == (B, sum(m[-1] for m in mlp_list), npoint)
    assert bool(jnp.all(jnp.isfinite(new_points)))
    print("KERNEL_OK")
</pallas_src>

<mosaic_0001>
module attributes {stable_mosaic.version = 11 : i64} {
  func.func @kernel(%arg0: i32, %arg1: memref<512x7xbf16, #tpu.memory_space<vmem>>, %arg2: memref<7x16xbf16, #tpu.memory_space<vmem>>, %arg3: memref<16x32xbf16, #tpu.memory_space<vmem>>, %arg4: memref<32x128xbf16, #tpu.memory_space<vmem>>, %arg5: memref<1x16xf32, #tpu.memory_space<vmem>>, %arg6: memref<1x32xf32, #tpu.memory_space<vmem>>, %arg7: memref<1x128xf32, #tpu.memory_space<vmem>>, %arg8: memref<32x128xf32, #tpu.memory_space<vmem>>) attributes {dimension_semantics = [#tpu.dimension_semantics<parallel>], iteration_bounds = array<i64: 1>, scalar_prefetch = 0 : i64, scratch_operands = 0 : i64, tpu.core_type = #tpu.core_type<tc>, window_params = [{transform_indices = @transform_0, window_bounds = array<i64: 512, 7>}, {pipeline_mode = #tpu.pipeline_mode<synchronous>, transform_indices = @transform_1, window_bounds = array<i64: 7, 16>}, {pipeline_mode = #tpu.pipeline_mode<synchronous>, transform_indices = @transform_2, window_bounds = array<i64: 16, 32>}, {pipeline_mode = #tpu.pipeline_mode<synchronous>, transform_indices = @transform_3, window_bounds = array<i64: 32, 128>}, {pipeline_mode = #tpu.pipeline_mode<synchronous>, transform_indices = @transform_4, window_bounds = array<i64: 1, 16>}, {pipeline_mode = #tpu.pipeline_mode<synchronous>, transform_indices = @transform_5, window_bounds = array<i64: 1, 32>}, {pipeline_mode = #tpu.pipeline_mode<synchronous>, transform_indices = @transform_6, window_bounds = array<i64: 1, 128>}, {transform_indices = @transform_7, window_bounds = array<i64: 32, 128>}]} {
    %c0 = arith.constant 0 : index
    %c0_0 = arith.constant 0 : index
    %0 = vector.load %arg1[%c0, %c0_0] : memref<512x7xbf16, #tpu.memory_space<vmem>>, vector<512x7xbf16>
    %c0_1 = arith.constant 0 : index
    %c0_2 = arith.constant 0 : index
    %1 = vector.load %arg2[%c0_1, %c0_2] : memref<7x16xbf16, #tpu.memory_space<vmem>>, vector<7x16xbf16>
    %cst = arith.constant dense<0.000000e+00> : vector<512x16xf32>
    %2 = tpu.matmul %0, %1, %cst {dimension_numbers = #tpu.dot_dimension_numbers<[1], [0], [0], [1], [0, 0, 1, 1], [], []>} : vector<512x7xbf16>, vector<7x16xbf16>, vector<512x16xf32> -> vector<512x16xf32>
    %c0_3 = arith.constant 0 : index
    %c0_4 = arith.constant 0 : index
    %3 = vector.load %arg5[%c0_3, %c0_4] : memref<1x16xf32, #tpu.memory_space<vmem>>, vector<1x16xf32>
    %4 = vector.broadcast %3 : vector<1x16xf32> to vector<512x16xf32>
    %5 = arith.addf %2, %4 : vector<512x16xf32>
    %cst_5 = arith.constant 0.000000e+00 : f32
    %6 = vector.broadcast %cst_5 : f32 to vector<512x16xf32>
    %7 = arith.maximumf %5, %6 : vector<512x16xf32>
    %8 = arith.truncf %7 : vector<512x16xf32> to vector<512x16xbf16>
    %c0_6 = arith.constant 0 : index
    %c0_7 = arith.constant 0 : index
    %9 = vector.load %arg3[%c0_6, %c0_7] : memref<16x32xbf16, #tpu.memory_space<vmem>>, vector<16x32xbf16>
    %cst_8 = arith.constant dense<0.000000e+00> : vector<512x32xf32>
    %10 = tpu.matmul %8, %9, %cst_8 {dimension_numbers = #tpu.dot_dimension_numbers<[1], [0], [0], [1], [0, 0, 1, 1], [], []>} : vector<512x16xbf16>, vector<16x32xbf16>, vector<512x32xf32> -> vector<512x32xf32>
    %c0_9 = arith.constant 0 : index
    %c0_10 = arith.constant 0 : index
    %11 = vector.load %arg6[%c0_9, %c0_10] : memref<1x32xf32, #tpu.memory_space<vmem>>, vector<1x32xf32>
    %12 = vector.broadcast %11 : vector<1x32xf32> to vector<512x32xf32>
    %13 = arith.addf %10, %12 : vector<512x32xf32>
    %cst_11 = arith.constant 0.000000e+00 : f32
    %14 = vector.broadcast %cst_11 : f32 to vector<512x32xf32>
    %15 = arith.maximumf %13, %14 : vector<512x32xf32>
    %16 = arith.truncf %15 : vector<512x32xf32> to vector<512x32xbf16>
    %c0_12 = arith.constant 0 : index
    %c0_13 = arith.constant 0 : index
    %17 = vector.load %arg4[%c0_12, %c0_13] : memref<32x128xbf16, #tpu.memory_space<vmem>>, vector<32x128xbf16>
    %cst_14 = arith.constant dense<0.000000e+00> : vector<512x128xf32>
    %18 = tpu.matmul %16, %17, %cst_14 {dimension_numbers = #tpu.dot_dimension_numbers<[1], [0], [0], [1], [0, 0, 1, 1], [], []>} : vector<512x32xbf16>, vector<32x128xbf16>, vector<512x128xf32> -> vector<512x128xf32>
    %c0_15 = arith.constant 0 : index
    %c0_16 = arith.constant 0 : index
    %19 = vector.load %arg7[%c0_15, %c0_16] : memref<1x128xf32, #tpu.memory_space<vmem>>, vector<1x128xf32>
    %20 = vector.broadcast %19 : vector<1x128xf32> to vector<512x128xf32>
    %21 = arith.addf %18, %20 : vector<512x128xf32>
    %cst_17 = arith.constant 0.000000e+00 : f32
    %22 = vector.broadcast %cst_17 : f32 to vector<512x128xf32>
    %23 = arith.maximumf %21, %22 : vector<512x128xf32>
    %24 = vector.shape_cast %23 : vector<512x128xf32> to vector<32x16x128xf32>
    %cst_18 = arith.constant dense<0xFF800000> : vector<32x128xf32>
    %25 = vector.multi_reduction <maximumf>, %24, %cst_18 [1] : vector<32x16x128xf32> to vector<32x128xf32>
    %c0_19 = arith.constant 0 : index
    %c0_20 = arith.constant 0 : index
    %26 = vector.load %arg8[%c0_19, %c0_20] : memref<32x128xf32, #tpu.memory_space<vmem>>, vector<32x128xf32>
    tpu.vector_store %arg8[%c0_19, %c0_20], %25 {strides = array<i32>} : memref<32x128xf32, #tpu.memory_space<vmem>>, vector<32x128xf32>,
    return
  }
  func.func @transform_0(%arg0: i32) -> (i32, i32) {
    %c0_i32 = arith.constant 0 : i32
    %c0_i32_0 = arith.constant 0 : i32
    return %arg0, %c0_i32 : i32, i32
  }
  func.func @transform_1(%arg0: i32) -> (i32, i32) {
    %c0_i32 = arith.constant 0 : i32
    %c0_i32_0 = arith.constant 0 : i32
    %c0_i32_1 = arith.constant 0 : i32
    return %c0_i32, %c0_i32_0 : i32, i32
  }
  func.func @transform_2(%arg0: i32) -> (i32, i32) {
    %c0_i32 = arith.constant 0 : i32
    %c0_i32_0 = arith.constant 0 : i32
    %c0_i32_1 = arith.constant 0 : i32
    return %c0_i32, %c0_i32_0 : i32, i32
  }
  func.func @transform_3(%arg0: i32) -> (i32, i32) {
    %c0_i32 = arith.constant 0 : i32
    %c0_i32_0 = arith.constant 0 : i32
    %c0_i32_1 = arith.constant 0 : i32
    return %c0_i32, %c0_i32_0 : i32, i32
  }
  func.func @transform_4(%arg0: i32) -> (i32, i32) {
    %c0_i32 = arith.constant 0 : i32
    %c0_i32_0 = arith.constant 0 : i32
    %c0_i32_1 = arith.constant 0 : i32
    return %c0_i32, %c0_i32_0 : i32, i32
  }
  func.func @transform_5(%arg0: i32) -> (i32, i32) {
    %c0_i32 = arith.constant 0 : i32
    %c0_i32_0 = arith.constant 0 : i32
    %c0_i32_1 = arith.constant 0 : i32
    return %c0_i32, %c0_i32_0 : i32, i32
  }
  func.func @transform_6(%arg0: i32) -> (i32, i32) {
    %c0_i32 = arith.constant 0 : i32
    %c0_i32_0 = arith.constant 0 : i32
    %c0_i32_1 = arith.constant 0 : i32
    return %c0_i32, %c0_i32_0 : i32, i32
  }
  func.func @transform_7(%arg0: i32) -> (i32, i32) {
    %c0_i32 = arith.constant 0 : i32
    %c0_i32_0 = arith.constant 0 : i32
    return %arg0, %c0_i32 : i32, i32
  }
}

module attributes {stable_mosaic.version = 11 : i64} {
  func.func @kernel(%arg0: i32, %arg1: memref<256x7xbf16, #tpu.memory_space<vmem>>, %arg2: memref<7x16xbf16, #tpu.memory_space<vmem>>, %arg3: memref<16x128xbf16, #tpu.memory_space<vmem>>, %arg4: memref<1x16xf32, #tpu.memory_space<vmem>>, %arg5: memref<1x128xf32, #tpu.memory_space<vmem>>, %arg6: memref<32x128xf32, #tpu.memory_space<vmem>>) attributes {dimension_semantics = [#tpu.dimension_semantics<parallel>], iteration_bounds = array<i64: 1>, scalar_prefetch = 0 : i64, scratch_operands = 0 : i64, tpu.core_type = #tpu.core_type<tc>, window_params = [{transform_indices = @transform_0, window_bounds = array<i64: 256, 7>}, {pipeline_mode = #tpu.pipeline_mode<synchronous>, transform_indices = @transform_1, window_bounds = array<i64: 7, 16>}, {pipeline_mode = #tpu.pipeline_mode<synchronous>, transform_indices = @transform_2, window_bounds = array<i64: 16, 128>}, {pipeline_mode = #tpu.pipeline_mode<synchronous>, transform_indices = @transform_3, window_bounds = array<i64: 1, 16>}, {pipeline_mode = #tpu.pipeline_mode<synchronous>, transform_indices = @transform_4, window_bounds = array<i64: 1, 128>}, {transform_indices = @transform_5, window_bounds = array<i64: 32, 128>}]} {
    %c0 = arith.constant 0 : index
    %c0_0 = arith.constant 0 : index
    %0 = vector.load %arg1[%c0, %c0_0] : memref<256x7xbf16, #tpu.memory_space<vmem>>, vector<256x7xbf16>
    %c0_1 = arith.constant 0 : index
    %c0_2 = arith.constant 0 : index
    %1 = vector.load %arg2[%c0_1, %c0_2] : memref<7x16xbf16, #tpu.memory_space<vmem>>, vector<7x16xbf16>
    %cst = arith.constant dense<0.000000e+00> : vector<256x16xf32>
    %2 = tpu.matmul %0, %1, %cst {dimension_numbers = #tpu.dot_dimension_numbers<[1], [0], [0], [1], [0, 0, 1, 1], [], []>} : vector<256x7xbf16>, vector<7x16xbf16>, vector<256x16xf32> -> vector<256x16xf32>
    %c0_3 = arith.constant 0 : index
    %c0_4 = arith.constant 0 : index
    %3 = vector.load %arg4[%c0_3, %c0_4] : memref<1x16xf32, #tpu.memory_space<vmem>>, vector<1x16xf32>
    %4 = vector.broadcast %3 : vector<1x16xf32> to vector<256x16xf32>
    %5 = arith.addf %2, %4 : vector<256x16xf32>
    %cst_5 = arith.constant 0.000000e+00 : f32
    %6 = vector.broadcast %cst_5 : f32 to vector<256x16xf32>
    %7 = arith.maximumf %5, %6 : vector<256x16xf32>
    %8 = arith.truncf %7 : vector<256x16xf32> to vector<256x16xbf16>
    %c0_6 = arith.constant 0 : index
    %c0_7 = arith.constant 0 : index
    %9 = vector.load %arg3[%c0_6, %c0_7] : memref<16x128xbf16, #tpu.memory_space<vmem>>, vector<16x128xbf16>
    %cst_8 = arith.constant dense<0.000000e+00> : vector<256x128xf32>
    %10 = tpu.matmul %8, %9, %cst_8 {dimension_numbers = #tpu.dot_dimension_numbers<[1], [0], [0], [1], [0, 0, 1, 1], [], []>} : vector<256x16xbf16>, vector<16x128xbf16>, vector<256x128xf32> -> vector<256x128xf32>
    %c0_9 = arith.constant 0 : index
    %c0_10 = arith.constant 0 : index
    %11 = vector.load %arg5[%c0_9, %c0_10] : memref<1x128xf32, #tpu.memory_space<vmem>>, vector<1x128xf32>
    %12 = vector.broadcast %11 : vector<1x128xf32> to vector<256x128xf32>
    %13 = arith.addf %10, %12 : vector<256x128xf32>
    %cst_11 = arith.constant 0.000000e+00 : f32
    %14 = vector.broadcast %cst_11 : f32 to vector<256x128xf32>
    %15 = arith.maximumf %13, %14 : vector<256x128xf32>
    %16 = vector.shape_cast %15 : vector<256x128xf32> to vector<32x8x128xf32>
    %cst_12 = arith.constant dense<0xFF800000> : vector<32x128xf32>
    %17 = vector.multi_reduction <maximumf>, %16, %cst_12 [1] : vector<32x8x128xf32> to vector<32x128xf32>
    %c0_13 = arith.constant 0 : index
    %c0_14 = arith.constant 0 : index
    %18 = vector.load %arg6[%c0_13, %c0_14] : memref<32x128xf32, #tpu.memory_space<vmem>>, vector<32x128xf32>
    tpu.vector_store %arg6[%c0_13, %c0_14], %17 {strides = array<i32>} : memref<32x128xf32, #tpu.memory_space<vmem>>, vector<32x128xf32>,
    return
  }
  func.func @transform_0(%arg0: i32) -> (i32, i32) {
    %c0_i32 = arith.constant 0 : i32
    %c0_i32_0 = arith.constant 0 : i32
    return %arg0, %c0_i32 : i32, i32
  }
  func.func @transform_1(%arg0: i32) -> (i32, i32) {
    %c0_i32 = arith.constant 0 : i32
    %c0_i32_0 = arith.constant 0 : i32
    %c0_i32_1 = arith.constant 0 : i32
    return %c0_i32, %c0_i32_0 : i32, i32
  }
  func.func @transform_2(%arg0: i32) -> (i32, i32) {
    %c0_i32 = arith.constant 0 : i32
    %c0_i32_0 = arith.constant 0 : i32
    %c0_i32_1 = arith.constant 0 : i32
    return %c0_i32, %c0_i32_0 : i32, i32
  }
  func.func @transform_3(%arg0: i32) -> (i32, i32) {
    %c0_i32 = arith.constant 0 : i32
    %c0_i32_0 = arith.constant 0 : i32
    %c0_i32_1 = arith.constant 0 : i32
    return %c0_i32, %c0_i32_0 : i32, i32
  }
  func.func @transform_4(%arg0: i32) -> (i32, i32) {
    %c0_i32 = arith.constant 0 : i32
    %c0_i32_0 = arith.constant 0 : i32
    %c0_i32_1 = arith.constant 0 : i32
    return %c0_i32, %c0_i32_0 : i32, i32
  }
  func.func @transform_5(%arg0: i32) -> (i32, i32) {
    %c0_i32 = arith.constant 0 : i32
    %c0_i32_0 = arith.constant 0 : i32
    return %arg0, %c0_i32 : i32, i32
  }
}

</mosaic_0001>

<llo_original>
// kernel: custom-call.12
$region0: #{custom-call.12}
  %s0 = inlined_call_operand.vmem [shape: f32[2,64], index: 0, kind: output, shape index: {}]

// kernel: pointnet_sa_msg_forward.3
$region0: #{pointnet_sa_msg_forward.3}
  #allocation0 [shape = 'u32[]', space=smem, size = 0x4, offset = 0x4, fixed_abs, tag = 'smem constant byte address 0x4 - core index']
  #allocation1 [shape = 'u32[144,128]{1,0:T(1,128)}', space=vmem, size = 0x12000, scoped, tag = 'internal scratch']
  %s0 = inlined_call_operand.vmem [shape: bf16[512,7], index: 0, kind: input, shape index: {}]
  %s1 = inlined_call_operand.vmem [shape: bf16[7,16], index: 1, kind: input, shape index: {}]
  %s2 = inlined_call_operand.vmem [shape: bf16[16,32], index: 2, kind: input, shape index: {}]
  %s3 = inlined_call_operand.vmem [shape: bf16[32,128], index: 3, kind: input, shape index: {}]
  %s4 = inlined_call_operand.vmem [shape: f32[1,16], index: 4, kind: input, shape index: {}]
  %s5 = inlined_call_operand.vmem [shape: f32[1,32], index: 5, kind: input, shape index: {}]
  %s6 = inlined_call_operand.vmem [shape: f32[1,128], index: 6, kind: input, shape index: {}]
  %s7 = inlined_call_operand.vmem [shape: f32[32,128], index: 7, kind: output, shape index: {}]
  %s8 = sld [smem:[#allocation0]]
  $region38: #{pointnet_sa_msg_forward.3} parent=0
    _
  %s10 = ssub.s32 1, %s8
  %s11 = scalar_select 0, %s10, %s8
  // Predicated region
  $region2: #{pointnet_sa_msg_forward.3} parent=0 // pred_check
    _
  $region3: #{pointnet_sa_msg_forward.3} parent=0 // pred_check_branch
    %13 = sbr.rel (0) target = $region5
  $region4: #{pointnet_sa_msg_forward.3} parent=0 // pred_region
    _
  $region5: #{pointnet_sa_msg_forward.3} parent=0 // pred_fallthru
    _
  // Predicated region
  $region6: #{pointnet_sa_msg_forward.3} parent=0 // pred_check
    _
  $region7: #{pointnet_sa_msg_forward.3} parent=0 // pred_check_branch
    %15 = sbr.rel (0) target = $region9
  $region8: #{pointnet_sa_msg_forward.3} parent=0 // pred_region
    _
  $region9: #{pointnet_sa_msg_forward.3} parent=0 // pred_fallthru
    _
  // Predicated region
  $region10: #{pointnet_sa_msg_forward.3} parent=0 // pred_check
    _
  $region11: #{pointnet_sa_msg_forward.3} parent=0 // pred_check_branch
    %17 = sbr.rel (0) target = $region13
  $region12: #{pointnet_sa_msg_forward.3} parent=0 // pred_region
    _
  $region13: #{pointnet_sa_msg_forward.3} parent=0 // pred_fallthru
    _
  // Predicated region
  $region14: #{pointnet_sa_msg_forward.3} parent=0 // pred_check
    _
  $region15: #{pointnet_sa_msg_forward.3} parent=0 // pred_check_branch
    %19 = sbr.rel (0) target = $region17
  $region16: #{pointnet_sa_msg_forward.3} parent=0 // pred_region
    _
  $region17: #{pointnet_sa_msg_forward.3} parent=0 // pred_fallthru
    _
  // Predicated region
  $region18: #{pointnet_sa_msg_forward.3} parent=0 // pred_check
    _
  $region19: #{pointnet_sa_msg_forward.3} parent=0 // pred_check_branch
    %21 = sbr.rel (0) target = $region21
  $region20: #{pointnet_sa_msg_forward.3} parent=0 // pred_region
    _
  $region21: #{pointnet_sa_msg_forward.3} parent=0 // pred_fallthru
    _
  // Predicated region
  $region22: #{pointnet_sa_msg_forward.3} parent=0 // pred_check
    _
  $region23: #{pointnet_sa_msg_forward.3} parent=0 // pred_check_branch
    %23 = sbr.rel (0) target = $region25
  $region24: #{pointnet_sa_msg_forward.3} parent=0 // pred_region
    _
  $region25: #{pointnet_sa_msg_forward.3} parent=0 // pred_fallthru
    _
  // Predicated region
  $region26: #{pointnet_sa_msg_forward.3} parent=0 // pred_check
    _
  $region27: #{pointnet_sa_msg_forward.3} parent=0 // pred_check_branch
    %25 = sbr.rel (0) target = $region29
  $region28: #{pointnet_sa_msg_forward.3} parent=0 // pred_region
    _
  $region29: #{pointnet_sa_msg_forward.3} parent=0 // pred_fallthru
    _
  %v27 = vld [vmem:[%s0] sm:$0xf]
  %v28 = vld [vmem:[%s0 + $0x4] sm:$0xf]
  %v29 = vld [vmem:[%s0 + $0x8] sm:$0xf]
  %v30 = vld [vmem:[%s0 + $0xc] sm:$0xf]
  %v31 = vld [vmem:[%s0 + $0x10] sm:$0xf]
  %v32 = vld [vmem:[%s0 + $0x14] sm:$0xf]
  %v33 = vld [vmem:[%s0 + $0x18] sm:$0xf]
  %v34 = vld [vmem:[%s0 + $0x1c] sm:$0xf]
  %v35 = vld [vmem:[%s0 + $0x20] sm:$0xf]
  %v36 = vld [vmem:[%s0 + $0x24] sm:$0xf]
  %v37 = vld [vmem:[%s0 + $0x28] sm:$0xf]
  %v38 = vld [vmem:[%s0 + $0x2c] sm:$0xf]
  %v39 = vld [vmem:[%s0 + $0x30] sm:$0xf]
  %v40 = vld [vmem:[%s0 + $0x34] sm:$0xf]
  %v41 = vld [vmem:[%s0 + $0x38] sm:$0xf]
  %v42 = vld [vmem:[%s0 + $0x3c] sm:$0xf]
  %v43 = vld [vmem:[%s0 + $0x40] sm:$0xf]
  %v44 = vld [vmem:[%s0 + $0x44] sm:$0xf]
  %v45 = vld [vmem:[%s0 + $0x48] sm:$0xf]
  %v46 = vld [vmem:[%s0 + $0x4c] sm:$0xf]
  %v47 = vld [vmem:[%s0 + $0x50] sm:$0xf]
  %v48 = vld [vmem:[%s0 + $0x54] sm:$0xf]
  %v49 = vld [vmem:[%s0 + $0x58] sm:$0xf]
  %v50 = vld [vmem:[%s0 + $0x5c] sm:$0xf]
  %v51 = vld [vmem:[%s0 + $0x60] sm:$0xf]
  %v52 = vld [vmem:[%s0 + $0x64] sm:$0xf]
  %v53 = vld [vmem:[%s0 + $0x68] sm:$0xf]
  %v54 = vld [vmem:[%s0 + $0x6c] sm:$0xf]
  %v55 = vld [vmem:[%s0 + $0x70] sm:$0xf]
  %v56 = vld [vmem:[%s0 + $0x74] sm:$0xf]
  %v57 = vld [vmem:[%s0 + $0x78] sm:$0xf]
  %v58 = vld [vmem:[%s0 + $0x7c] sm:$0xf]
  %v59 = vld [vmem:[%s0 + $0x80] sm:$0xf]
  %v60 = vld [vmem:[%s0 + $0x84] sm:$0xf]
  %v61 = vld [vmem:[%s0 + $0x88] sm:$0xf]
  %v62 = vld [vmem:[%s0 + $0x8c] sm:$0xf]
  %v63 = vld [vmem:[%s0 + $0x90] sm:$0xf]
  %v64 = vld [vmem:[%s0 + $0x94] sm:$0xf]
  %v65 = vld [vmem:[%s0 + $0x98] sm:$0xf]
  %v66 = vld [vmem:[%s0 + $0x9c] sm:$0xf]
  %v67 = vld [vmem:[%s0 + $0xa0] sm:$0xf]
  %v68 = vld [vmem:[%s0 + $0xa4] sm:$0xf]
  %v69 = vld [vmem:[%s0 + $0xa8] sm:$0xf]
  %v70 = vld [vmem:[%s0 + $0xac] sm:$0xf]
  %v71 = vld [vmem:[%s0 + $0xb0] sm:$0xf]
  %v72 = vld [vmem:[%s0 + $0xb4] sm:$0xf]
  %v73 = vld [vmem:[%s0 + $0xb8] sm:$0xf]
  %v74 = vld [vmem:[%s0 + $0xbc] sm:$0xf]
  %v75 = vld [vmem:[%s0 + $0xc0] sm:$0xf]
  %v76 = vld [vmem:[%s0 + $0xc4] sm:$0xf]
  %v77 = vld [vmem:[%s0 + $0xc8] sm:$0xf]
  %v78 = vld [vmem:[%s0 + $0xcc] sm:$0xf]
  %v79 = vld [vmem:[%s0 + $0xd0] sm:$0xf]
  %v80 = vld [vmem:[%s0 + $0xd4] sm:$0xf]
  %v81 = vld [vmem:[%s0 + $0xd8] sm:$0xf]
  %v82 = vld [vmem:[%s0 + $0xdc] sm:$0xf]
  %v83 = vld [vmem:[%s0 + $0xe0] sm:$0xf]
  %v84 = vld [vmem:[%s0 + $0xe4] sm:$0xf]
  %v85 = vld [vmem:[%s0 + $0xe8] sm:$0xf]
  %v86 = vld [vmem:[%s0 + $0xec] sm:$0xf]
  %v87 = vld [vmem:[%s0 + $0xf0] sm:$0xf]
  %v88 = vld [vmem:[%s0 + $0xf4] sm:$0xf]
  %v89 = vld [vmem:[%s0 + $0xf8] sm:$0xf]
  %v90 = vld [vmem:[%s0 + $0xfc] sm:$0xf]
  %v91 = vld [vmem:[%s1] sm:$0xf]
  %v92 = vld [vmem:[%s4] sm:$0x1]
  %v94 = vlaneseq
  %v95 = vshrl.u32 %v94, 7
  %v96 = vsub.s32 0, %v95
  %v97 = vrot.slane %v92, %v96
  %v163 = vunpack.c.l.b16 %v27
  %v164 = vunpack.c.l.b16 %v28
  %v165 = vunpack.c.l.b16 %v29
  %v166 = vunpack.c.l.b16 %v30
  %v167 = vunpack.c.l.b16 %v31
  %v168 = vunpack.c.l.b16 %v32
  %v169 = vunpack.c.l.b16 %v33
  %v170 = vunpack.c.l.b16 %v34
  %v171 = vunpack.c.l.b16 %v35
  %v172 = vunpack.c.l.b16 %v36
  %v173 = vunpack.c.l.b16 %v37
  %v174 = vunpack.c.l.b16 %v38
  %v175 = vunpack.c.l.b16 %v39
  %v176 = vunpack.c.l.b16 %v40
  %v177 = vunpack.c.l.b16 %v41
  %v178 = vunpack.c.l.b16 %v42
  %v179 = vunpack.c.l.b16 %v43
  %v180 = vunpack.c.l.b16 %v44
  %v181 = vunpack.c.l.b16 %v45
  %v182 = vunpack.c.l.b16 %v46
  %v183 = vunpack.c.l.b16 %v47
  %v184 = vunpack.c.l.b16 %v48
  %v185 = vunpack.c.l.b16 %v49
  %v186 = vunpack.c.l.b16 %v50
  %v187 = vunpack.c.l.b16 %v51
  %v188 = vunpack.c.l.b16 %v52
  %v189 = vunpack.c.l.b16 %v53
  %v190 = vunpack.c.l.b16 %v54
  %v191 = vunpack.c.l.b16 %v55
  %v192 = vunpack.c.l.b16 %v56
  %v193 = vunpack.c.l.b16 %v57
  %v194 = vunpack.c.l.b16 %v58
  %v195 = vunpack.c.l.b16 %v59
  %v196 = vunpack.c.l.b16 %v60
  %v197 = vunpack.c.l.b16 %v61
  %v198 = vunpack.c.l.b16 %v62
  %v199 = vunpack.c.l.b16 %v63
  %v200 = vunpack.c.l.b16 %v64
  %v201 = vunpack.c.l.b16 %v65
  %v202 = vunpack.c.l.b16 %v66
  %v203 = vunpack.c.l.b16 %v67
  %v204 = vunpack.c.l.b16 %v68
  %v205 = vunpack.c.l.b16 %v69
  %v206 = vunpack.c.l.b16 %v70
  %v207 = vunpack.c.l.b16 %v71
  %v208 = vunpack.c.l.b16 %v72
  %v209 = vunpack.c.l.b16 %v73
  %v210 = vunpack.c.l.b16 %v74
  %v211 = vunpack.c.l.b16 %v75
  %v212 = vunpack.c.l.b16 %v76
  %v213 = vunpack.c.l.b16 %v77
  %v214 = vunpack.c.l.b16 %v78
  %v215 = vunpack.c.l.b16 %v79
  %v216 = vunpack.c.l.b16 %v80
  %v217 = vunpack.c.l.b16 %v81
  %v218 = vunpack.c.l.b16 %v82
  %v219 = vunpack.c.l.b16 %v83
  %v220 = vunpack.c.l.b16 %v84
  %v221 = vunpack.c.l.b16 %v85
  %v222 = vunpack.c.l.b16 %v86
  %v223 = vunpack.c.l.b16 %v87
  %v224 = vunpack.c.l.b16 %v88
  %v225 = vunpack.c.l.b16 %v89
  %v226 = vunpack.c.l.b16 %v90
  %v227 = vpack.c.b16 %v164, %v163
  %v228 = vpack.c.b16 %v166, %v165
  %v229 = vpack.c.b16 %v168, %v167
  %v230 = vpack.c.b16 %v170, %v169
  %v231 = vpack.c.b16 %v172, %v171
  %v232 = vpack.c.b16 %v174, %v173
  %v233 = vpack.c.b16 %v176, %v175
  %v234 = vpack.c.b16 %v178, %v177
  %v235 = vpack.c.b16 %v180, %v179
  %v236 = vpack.c.b16 %v182, %v181
  %v237 = vpack.c.b16 %v184, %v183
  %v238 = vpack.c.b16 %v186, %v185
  %v239 = vpack.c.b16 %v188, %v187
  %v240 = vpack.c.b16 %v190, %v189
  %v241 = vpack.c.b16 %v192, %v191
  %v242 = vpack.c.b16 %v194, %v193
  %v243 = vpack.c.b16 %v196, %v195
  %v244 = vpack.c.b16 %v198, %v197
  %v245 = vpack.c.b16 %v200, %v199
  %v246 = vpack.c.b16 %v202, %v201
  %v247 = vpack.c.b16 %v204, %v203
  %v248 = vpack.c.b16 %v206, %v205
  %v249 = vpack.c.b16 %v208, %v207
  %v250 = vpack.c.b16 %v210, %v209
  %v251 = vpack.c.b16 %v212, %v211
  %v252 = vpack.c.b16 %v214, %v213
  %v253 = vpack.c.b16 %v216, %v215
  %v254 = vpack.c.b16 %v218, %v217
  %v255 = vpack.c.b16 %v220, %v219
  %v256 = vpack.c.b16 %v222, %v221
  %v257 = vpack.c.b16 %v224, %v223
  %v258 = vpack.c.b16 %v226, %v225
  %vm259 = vcmask 56320
  %v261 = vsel %vm259, %v227, 0
  %v264 = vsel %vm259, %v228, 0
  %v267 = vsel %vm259, %v229, 0
  %v270 = vsel %vm259, %v230, 0
  %v273 = vsel %vm259, %v231, 0
  %v276 = vsel %vm259, %v232, 0
  %v279 = vsel %vm259, %v233, 0
  %v282 = vsel %vm259, %v234, 0
  %v285 = vsel %vm259, %v235, 0
  %v288 = vsel %vm259, %v236, 0
  %v291 = vsel %vm259, %v237, 0
  %v294 = vsel %vm259, %v238, 0
  %v297 = vsel %vm259, %v239, 0
  %v300 = vsel %vm259, %v240, 0
  %v303 = vsel %vm259, %v241, 0
  %v306 = vsel %vm259, %v242, 0
  %v309 = vsel %vm259, %v243, 0
  %v312 = vsel %vm259, %v244, 0
  %v315 = vsel %vm259, %v245, 0
  %v318 = vsel %vm259, %v246, 0
  %v321 = vsel %vm259, %v247, 0
  %v324 = vsel %vm259, %v248, 0
  %v327 = vsel %vm259, %v249, 0
  %v330 = vsel %vm259, %v250, 0
  %v333 = vsel %vm259, %v251, 0
  %v336 = vsel %vm259, %v252, 0
  %v339 = vsel %vm259, %v253, 0
  %v342 = vsel %vm259, %v254, 0
  %v345 = vsel %vm259, %v255, 0
  %v348 = vsel %vm259, %v256, 0
  %v351 = vsel %vm259, %v257, 0
  %v354 = vsel %vm259, %v258, 0
  %vm356 = vcmask 1042432
  %vm357 = vcmask 1043456
  %v358 = vsel %vm356, 4294967295, 65535
  %v359 = vsel %vm357, %v358, 0
  %v361 = vand.u32 %v91, %v359
  %363 = vmatprep.subr.bf16.mxu0 0
  %364 = vmatpush1.bf16.msra.mxu0 %v361
  %365 = vmatprep.subr.bf16.mxu0 0
  %366 = vmatpush1.bf16.msra.mxu0 0
  %367 = vmatprep.subr.bf16.mxu0 0
  %368 = vmatpush1.bf16.msra.mxu0 0
  %369 = vmatprep.subr.bf16.mxu0 0
  %370 = vmatpush1.bf16.msra.mxu0 0
  %371 = vmatprep.subr.bf16.mxu0 0
  %372 = vmatpush1.bf16.msra.mxu0 0
  %373 = vmatprep.subr.bf16.mxu0 0
  %374 = vmatpush1.bf16.msra.mxu0 0
  %375 = vmatprep.subr.bf16.mxu0 0
  %376 = vmatpush1.bf16.msra.mxu0 0
  %377 = vmatprep.subr.bf16.mxu0 0
  %378 = vmatpush1.bf16.msra.mxu0 0
  %379 = vmatprep.subr.bf16.mxu0 0
  %380 = vmatpush1.bf16.msra.mxu0 0
  %381 = vmatprep.subr.bf16.mxu0 0
  %382 = vmatpush1.bf16.msra.mxu0 0
  %383 = vmatprep.subr.bf16.mxu0 0
  %384 = vmatpush1.bf16.msra.mxu0 0
  %385 = vmatprep.subr.bf16.mxu0 0
  %386 = vmatpush1.bf16.msra.mxu0 0
  %387 = vmatprep.subr.bf16.mxu0 0
  %388 = vmatpush1.bf16.msra.mxu0 0
  %389 = vmatprep.subr.bf16.mxu0 0
  %390 = vmatpush1.bf16.msra.mxu0 0
  %391 = vmatprep.subr.bf16.mxu0 0
  %392 = vmatpush1.bf16.msra.mxu0 0
  %393 = vmatprep.subr.bf16.mxu0 0
  %394 = vmatpush1.bf16.msra.mxu0 0
  %395 = vmatprep.mubr.bf16.mxu0 0
  %396 = vmatmul.mubr.bf16.gmra.mrb[0].mxu0 %v261
  %v397 = vpop.f32.mrb[0].mxu0
  %v398 = vadd.f32 %v97, %v397
  %v399 = vpop.f32.mrb[0].mxu0
  %v400 = vpop.f32.mrb[0].mxu0
  %v401 = vadd.f32 %v97, %v400
  %v402 = vpop.f32.mrb[0].mxu0
  %403 = vmatprep.mubr.bf16.mxu0 0
  %404 = vmatmul.mubr.bf16.gmra.mrb[0].mxu0 %v264
  %v405 = vpop.f32.mrb[0].mxu0
  %v406 = vadd.f32 %v97, %v405
  %v407 = vpop.f32.mrb[0].mxu0
  %v408 = vpop.f32.mrb[0].mxu0
  %v409 = vadd.f32 %v97, %v408
  %v410 = vpop.f32.mrb[0].mxu0
  %411 = vmatprep.mubr.bf16.mxu0 0
  %412 = vmatmul.mubr.bf16.gmra.mrb[0].mxu0 %v267
  %v413 = vpop.f32.mrb[0].mxu0
  %v414 = vadd.f32 %v97, %v413
  %v415 = vpop.f32.mrb[0].mxu0
  %v416 = vpop.f32.mrb[0].mxu0
  %v417 = vadd.f32 %v97, %v416
  %v418 = vpop.f32.mrb[0].mxu0
  %419 = vmatprep.mubr.bf16.mxu0 0
  %420 = vmatmul.mubr.bf16.gmra.mrb[0].mxu0 %v270
  %v421 = vpop.f32.mrb[0].mxu0
  %v422 = vadd.f32 %v97, %v421
  %v423 = vpop.f32.mrb[0].mxu0
  %v424 = vpop.f32.mrb[0].mxu0
  %v425 = vadd.f32 %v97, %v424
  %v426 = vpop.f32.mrb[0].mxu0
  %427 = vmatprep.mubr.bf16.mxu0 0
  %428 = vmatmul.mubr.bf16.gmra.mrb[0].mxu0 %v273
  %v429 = vpop.f32.mrb[0].mxu0
  %v430 = vadd.f32 %v97, %v429
  %v431 = vpop.f32.mrb[0].mxu0
  %v432 = vpop.f32.mrb[0].mxu0
  %v433 = vadd.f32 %v97, %v432
  %v434 = vpop.f32.mrb[0].mxu0
  %435 = vmatprep.mubr.bf16.mxu0 0
  %436 = vmatmul.mubr.bf16.gmra.mrb[0].mxu0 %v276
  %v437 = vpop.f32.mrb[0].mxu0
  %v438 = vadd.f32 %v97, %v437
  %v439 = vpop.f32.mrb[0].mxu0
  %v440 = vpop.f32.mrb[0].mxu0
  %v441 = vadd.f32 %v97, %v440
  %v442 = vpop.f32.mrb[0].mxu0
  %443 = vmatprep.mubr.bf16.mxu0 0
  %444 = vmatmul.mubr.bf16.gmra.mrb[0].mxu0 %v279
  %v445 = vpop.f32.mrb[0].mxu0
  %v446 = vadd.f32 %v97, %v445
  %v447 = vpop.f32.mrb[0].mxu0
  %v448 = vpop.f32.mrb[0].mxu0
  %v449 = vadd.f32 %v97, %v448
  %v450 = vpop.f32.mrb[0].mxu0
  %451 = vmatprep.mubr.bf16.mxu0 0
  %452 = vmatmul.mubr.bf16.gmra.mrb[0].mxu0 %v282
  %v453 = vpop.f32.mrb[0].mxu0
  %v454 = vadd.f32 %v97, %v453
  %v455 = vpop.f32.mrb[0].mxu0
  %v456 = vpop.f32.mrb[0].mxu0
  %v457 = vadd.f32 %v97, %v456
  %v458 = vpop.f32.mrb[0].mxu0
  %459 = vmatprep.mubr.bf16.mxu0 0
  %460 = vmatmul.mubr.bf16.gmra.mrb[0].mxu0 %v285
  %v461 = vpop.f32.mrb[0].mxu0
  %v462 = vadd.f32 %v97, %v461
  %v463 = vpop.f32.mrb[0].mxu0
  %v464 = vpop.f32.mrb[0].mxu0
  %v465 = vadd.f32 %v97, %v464
  %v466 = vpop.f32.mrb[0].mxu0
  %467 = vmatprep.mubr.bf16.mxu0 0
  %468 = vmatmul.mubr.bf16.gmra.mrb[0].mxu0 %v288
  %v469 = vpop.f32.mrb[0].mxu0
  %v470 = vadd.f32 %v97, %v469
  %v471 = vpop.f32.mrb[0].mxu0
  %v472 = vpop.f32.mrb[0].mxu0
  %v473 = vadd.f32 %v97, %v472
  %v474 = vpop.f32.mrb[0].mxu0
  %475 = vmatprep.mubr.bf16.mxu0 0
  %476 = vmatmul.mubr.bf16.gmra.mrb[0].mxu0 %v291
  %v477 = vpop.f32.mrb[0].mxu0
  %v478 = vadd.f32 %v97, %v477
  %v479 = vpop.f32.mrb[0].mxu0
  %v480 = vpop.f32.mrb[0].mxu0
  %v481 = vadd.f32 %v97, %v480
  %v482 = vpop.f32.mrb[0].mxu0
  %483 = vmatprep.mubr.bf16.mxu0 0
  %484 = vmatmul.mubr.bf16.gmra.mrb[0].mxu0 %v294
  %v485 = vpop.f32.mrb[0].mxu0
  %v486 = vadd.f32 %v97, %v485
  %v487 = vpop.f32.mrb[0].mxu0
  %v488 = vpop.f32.mrb[0].mxu0
  %v489 = vadd.f32 %v97, %v488
  %v490 = vpop.f32.mrb[0].mxu0
  %491 = vmatprep.mubr.bf16.mxu0 0
  %492 = vmatmul.mubr.bf16.gmra.mrb[0].mxu0 %v297
  %v493 = vpop.f32.mrb[0].mxu0
  %v494 = vadd.f32 %v97, %v493
  %v495 = vpop.f32.mrb[0].mxu0
  %v496 = vpop.f32.mrb[0].mxu0
  %v497 = vadd.f32 %v97, %v496
  %v498 = vpop.f32.mrb[0].mxu0
  %499 = vmatprep.mubr.bf16.mxu0 0
  %500 = vmatmul.mubr.bf16.gmra.mrb[0].mxu0 %v300
  %v501 = vpop.f32.mrb[0].mxu0
  %v502 = vadd.f32 %v97, %v501
  %v503 = vpop.f32.mrb[0].mxu0
  %v504 = vpop.f32.mrb[0].mxu0
  %v505 = vadd.f32 %v97, %v504
  %v506 = vpop.f32.mrb[0].mxu0
  %507 = vmatprep.mubr.bf16.mxu0 0
  %508 = vmatmul.mubr.bf16.gmra.mrb[0].mxu0 %v303
  %v509 = vpop.f32.mrb[0].mxu0
  %v510 = vadd.f32 %v97, %v509
  %v511 = vpop.f32.mrb[0].mxu0
  %v512 = vpop.f32.mrb[0].mxu0
  %v513 = vadd.f32 %v97, %v512
  %v514 = vpop.f32.mrb[0].mxu0
  %515 = vmatprep.mubr.bf16.mxu0 0
  %516 = vmatmul.mubr.bf16.gmra.mrb[0].mxu0 %v306
  %v517 = vpop.f32.mrb[0].mxu0
  %v518 = vadd.f32 %v97, %v517
  %v519 = vpop.f32.mrb[0].mxu0
  %v520 = vpop.f32.mrb[0].mxu0
  %v521 = vadd.f32 %v97, %v520
  %v522 = vpop.f32.mrb[0].mxu0
  %523 = vmatprep.mubr.bf16.mxu0 0
  %524 = vmatmul.mubr.bf16.gmra.mrb[0].mxu0 %v309
  %v525 = vpop.f32.mrb[0].mxu0
  %v526 = vadd.f32 %v97, %v525
  %v527 = vpop.f32.mrb[0].mxu0
  %v528 = vpop.f32.mrb[0].mxu0
  %v529 = vadd.f32 %v97, %v528
  %v530 = vpop.f32.mrb[0].mxu0
  %531 = vmatprep.mubr.bf16.mxu0 0
  %532 = vmatmul.mubr.bf16.gmra.mrb[0].mxu0 %v312
  %v533 = vpop.f32.mrb[0].mxu0
  %v534 = vadd.f32 %v97, %v533
  %v535 = vpop.f32.mrb[0].mxu0
  %v536 = vpop.f32.mrb[0].mxu0
  %v537 = vadd.f32 %v97, %v536
  %v538 = vpop.f32.mrb[0].mxu0
  %539 = vmatprep.mubr.bf16.mxu0 0
  %540 = vmatmul.mubr.bf16.gmra.mrb[0].mxu0 %v315
  %v541 = vpop.f32.mrb[0].mxu0
  %v542 = vadd.f32 %v97, %v541
  %v543 = vpop.f32.mrb[0].mxu0
  %v544 = vpop.f32.mrb[0].mxu0
  %v545 = vadd.f32 %v97, %v544
  %v546 = vpop.f32.mrb[0].mxu0
  %547 = vmatprep.mubr.bf16.mxu0 0
  %548 = vmatmul.mubr.bf16.gmra.mrb[0].mxu0 %v318
  %v549 = vpop.f32.mrb[0].mxu0
  %v550 = vadd.f32 %v97, %v549
  %v551 = vpop.f32.mrb[0].mxu0
  %v552 = vpop.f32.mrb[0].mxu0
  %v553 = vadd.f32 %v97, %v552
  %v554 = vpop.f32.mrb[0].mxu0
  %555 = vmatprep.mubr.bf16.mxu0 0
  %556 = vmatmul.mubr.bf16.gmra.mrb[0].mxu0 %v321
  %v557 = vpop.f32.mrb[0].mxu0
  %v558 = vadd.f32 %v97, %v557
  %v559 = vpop.f32.mrb[0].mxu0
  %v560 = vpop.f32.mrb[0].mxu0
  %v561 = vadd.f32 %v97, %v560
  %v562 = vpop.f32.mrb[0].mxu0
  %563 = vmatprep.mubr.bf16.mxu0 0
  %564 = vmatmul.mubr.bf16.gmra.mrb[0].mxu0 %v324
  %v565 = vpop.f32.mrb[0].mxu0
  %v566 = vadd.f32 %v97, %v565
  %v567 = vpop.f32.mrb[0].mxu0
  %v568 = vpop.f32.mrb[0].mxu0
  %v569 = vadd.f32 %v97, %v568
  %v570 = vpop.f32.mrb[0].mxu0
  %571 = vmatprep.mubr.bf16.mxu0 0
  %572 = vmatmul.mubr.bf16.gmra.mrb[0].mxu0 %v327
  %v573 = vpop.f32.mrb[0].mxu0
  %v574 = vadd.f32 %v97, %v573
  %v575 = vpop.f32.mrb[0].mxu0
  %v576 = vpop.f32.mrb[0].mxu0
  %v577 = vadd.f32 %v97, %v576
  %v578 = vpop.f32.mrb[0].mxu0
  %579 = vmatprep.mubr.bf16.mxu0 0
  %580 = vmatmul.mubr.bf16.gmra.mrb[0].mxu0 %v330
  %v581 = vpop.f32.mrb[0].mxu0
  %v582 = vadd.f32 %v97, %v581
  %v583 = vpop.f32.mrb[0].mxu0
  %v584 = vpop.f32.mrb[0].mxu0
  %v585 = vadd.f32 %v97, %v584
  %v586 = vpop.f32.mrb[0].mxu0
  %587 = vmatprep.mubr.bf16.mxu0 0
  %588 = vmatmul.mubr.bf16.gmra.mrb[0].mxu0 %v333
  %v589 = vpop.f32.mrb[0].mxu0
  %v590 = vadd.f32 %v97, %v589
  %v591 = vpop.f32.mrb[0].mxu0
  %v592 = vpop.f32.mrb[0].mxu0
  %v593 = vadd.f32 %v97, %v592
  %v594 = vpop.f32.mrb[0].mxu0
  %595 = vmatprep.mubr.bf16.mxu0 0
  %596 = vmatmul.mubr.bf16.gmra.mrb[0].mxu0 %v336
  %v597 = vpop.f32.mrb[0].mxu0
  %v598 = vadd.f32 %v97, %v597
  %v599 = vpop.f32.mrb[0].mxu0
  %v600 = vpop.f32.mrb[0].mxu0
  %v601 = vadd.f32 %v97, %v600
  %v602 = vpop.f32.mrb[0].mxu0
  %603 = vmatprep.mubr.bf16.mxu0 0
  %604 = vmatmul.mubr.bf16.gmra.mrb[0].mxu0 %v339
  %v605 = vpop.f32.mrb[0].mxu0
  %v606 = vadd.f32 %v97, %v605
  %v607 = vpop.f32.mrb[0].mxu0
  %v608 = vpop.f32.mrb[0].mxu0
  %v609 = vadd.f32 %v97, %v608
  %v610 = vpop.f32.mrb[0].mxu0
  %611 = vmatprep.mubr.bf16.mxu0 0
  %612 = vmatmul.mubr.bf16.gmra.mrb[0].mxu0 %v342
  %v613 = vpop.f32.mrb[0].mxu0
  %v614 = vadd.f32 %v97, %v613
  %v615 = vpop.f32.mrb[0].mxu0
  %v616 = vpop.f32.mrb[0].mxu0
  %v617 = vadd.f32 %v97, %v616
  %v618 = vpop.f32.mrb[0].mxu0
  %619 = vmatprep.mubr.bf16.mxu0 0
  %620 = vmatmul.mubr.bf16.gmra.mrb[0].mxu0 %v345
  %v621 = vpop.f32.mrb[0].mxu0
  %v622 = vadd.f32 %v97, %v621
  %v623 = vpop.f32.mrb[0].mxu0
  %v624 = vpop.f32.mrb[0].mxu0
  %v625 = vadd.f32 %v97, %v624
  %v626 = vpop.f32.mrb[0].mxu0
  %627 = vmatprep.mubr.bf16.mxu0 0
  %628 = vmatmul.mubr.bf16.gmra.mrb[0].mxu0 %v348
  %v629 = vpop.f32.mrb[0].mxu0
  %v630 = vadd.f32 %v97, %v629
  %v631 = vpop.f32.mrb[0].mxu0
  %v632 = vpop.f32.mrb[0].mxu0
  %v633 = vadd.f32 %v97, %v632
  %v634 = vpop.f32.mrb[0].mxu0
  %635 = vmatprep.mubr.bf16.mxu0 0
  %636 = vmatmul.mubr.bf16.gmra.mrb[0].mxu0 %v351
  %v637 = vpop.f32.mrb[0].mxu0
  %v638 = vadd.f32 %v97, %v637
  %v639 = vpop.f32.mrb[0].mxu0
  %v640 = vpop.f32.mrb[0].mxu0
  %v641 = vadd.f32 %v97, %v640
  %v642 = vpop.f32.mrb[0].mxu0
  %643 = vmatprep.mubr.bf16.mxu0 0
  %644 = vmatmul.mubr.bf16.gmra.mrb[0].mxu0 %v354
  %v645 = vpop.f32.mrb[0].mxu0
  %v646 = vadd.f32 %v97, %v645
  %v647 = vpop.f32.mrb[0].mxu0
  %v648 = vpop.f32.mrb[0].mxu0
  %v649 = vadd.f32 %v97, %v648
  %v650 = vpop.f32.mrb[0].mxu0
  %651 = vdwg.mxu0
  %v652 = vmax.f32 %v398, 0.0
  %v653 = vmax.f32 %v401, 0.0
  %v654 = vmax.f32 %v406, 0.0
  %v655 = vmax.f32 %v409, 0.0
  %v656 = vmax.f32 %v414, 0.0
  %v657 = vmax.f32 %v417, 0.0
  %v658 = vmax.f32 %v422, 0.0
  %v659 = vmax.f32 %v425, 0.0
  %v660 = vmax.f32 %v430, 0.0
  %v661 = vmax.f32 %v433, 0.0
  %v662 = vmax.f32 %v438, 0.0
  %v663 = vmax.f32 %v441, 0.0
  %v664 = vmax.f32 %v446, 0.0
  %v665 = vmax.f32 %v449, 0.0
  %v666 = vmax.f32 %v454, 0.0
  %v667 = vmax.f32 %v457, 0.0
  %v668 = vmax.f32 %v462, 0.0
  %v669 = vmax.f32 %v465, 0.0
  %v670 = vmax.f32 %v470, 0.0
  %v671 = vmax.f32 %v473, 0.0
  %v672 = vmax.f32 %v478, 0.0
  %v673 = vmax.f32 %v481, 0.0
  %v674 = vmax.f32 %v486, 0.0
  %v675 = vmax.f32 %v489, 0.0
  %v676 = vmax.f32 %v494, 0.0
  %v677 = vmax.f32 %v497, 0.0
  %v678 = vmax.f32 %v502, 0.0
  %v679 = vmax.f32 %v505, 0.0
  %v680 = vmax.f32 %v510, 0.0
  %v681 = vmax.f32 %v513, 0.0
  %v682 = vmax.f32 %v518, 0.0
  %v683 = vmax.f32 %v521, 0.0
  %v684 = vmax.f32 %v526, 0.0
  %v685 = vmax.f32 %v529, 0.0
  %v686 = vmax.f32 %v534, 0.0
  %v687 = vmax.f32 %v537, 0.0
  %v688 = vmax.f32 %v542, 0.0
  %v689 = vmax.f32 %v545, 0.0
  %v690 = vmax.f32 %v550, 0.0
  %v691 = vmax.f32 %v553, 0.0
  %v692 = vmax.f32 %v558, 0.0
  %v693 = vmax.f32 %v561, 0.0
  %v694 = vmax.f32 %v566, 0.0
  %v695 = vmax.f32 %v569, 0.0
  %v696 = vmax.f32 %v574, 0.0
  %v697 = vmax.f32 %v577, 0.0
  %v698 = vmax.f32 %v582, 0.0
  %v699 = vmax.f32 %v585, 0.0
  %v700 = vmax.f32 %v590, 0.0
  %v701 = vmax.f32 %v593, 0.0
  %v702 = vmax.f32 %v598, 0.0
  %v703 = vmax.f32 %v601, 0.0
  %v704 = vmax.f32 %v606, 0.0
  %v705 = vmax.f32 %v609, 0.0
  %v706 = vmax.f32 %v614, 0.0
  %v707 = vmax.f32 %v617, 0.0
  %v708 = vmax.f32 %v622, 0.0
  %v709 = vmax.f32 %v625, 0.0
  %v710 = vmax.f32 %v630, 0.0
  %v711 = vmax.f32 %v633, 0.0
  %v712 = vmax.f32 %v638, 0.0
  %v713 = vmax.f32 %v641, 0.0
  %v714 = vmax.f32 %v646, 0.0
  %v715 = vmax.f32 %v649, 0.0
  %v716 = vpack.c.bf16 %v653, %v652
  %v717 = vpack.c.bf16 %v655, %v654
  %v718 = vpack.c.bf16 %v657, %v656
  %v719 = vpack.c.bf16 %v659, %v658
  %v720 = vpack.c.bf16 %v661, %v660
  %v721 = vpack.c.bf16 %v663, %v662
  %v722 = vpack.c.bf16 %v665, %v664
  %v723 = vpack.c.bf16 %v667, %v666
  %v724 = vpack.c.bf16 %v669, %v668
  %v725 = vpack.c.bf16 %v671, %v670
  %v726 = vpack.c.bf16 %v673, %v672
  %v727 = vpack.c.bf16 %v675, %v674
  %v728 = vpack.c.bf16 %v677, %v676
  %v729 = vpack.c.bf16 %v679, %v678
  %v730 = vpack.c.bf16 %v681, %v680
  %v731 = vpack.c.bf16 %v683, %v682
  %v732 = vpack.c.bf16 %v685, %v684
  %v733 = vpack.c.bf16 %v687, %v686
  %v734 = vpack.c.bf16 %v689, %v688
  %v735 = vpack.c.bf16 %v691, %v690
  %v736 = vpack.c.bf16 %v693, %v692
  %v737 = vpack.c.bf16 %v695, %v694
  %v738 = vpack.c.bf16 %v697, %v696
  %v739 = vpack.c.bf16 %v699, %v698
  %v740 = vpack.c.bf16 %v701, %v700
  %v741 = vpack.c.bf16 %v703, %v702
  %v742 = vpack.c.bf16 %v705, %v704
  %v743 = vpack.c.bf16 %v707, %v706
  %v744 = vpack.c.bf16 %v709, %v708
  %v745 = vpack.c.bf16 %v711, %v710
  %v746 = vpack.c.bf16 %v713, %v712
  %v747 = vpack.c.bf16 %v715, %v714
  %v748 = vld [vmem:[%s2] sm:$0xf]
  %v749 = vld [vmem:[%s2 + $0x4] sm:$0xf]
  %v750 = vld [vmem:[%s5] sm:$0x1]
  %v752 = vlaneseq
  %v753 = vshrl.u32 %v752, 7
  %v754 = vsub.s32 0, %v753
  %v755 = vrot.slane %v750, %v754
  %v759 = vunpack.c.l.b16 %v748
  %v760 = vunpack.c.l.b16 %v749
  %v761 = vpack.c.b16 %v760, %v759
  %vm763 = vcmask 130048
  %v765 = vsel %vm763, %v716, 0
  %v768 = vsel %vm763, %v717, 0
  %v771 = vsel %vm763, %v718, 0
  %v774 = vsel %vm763, %v719, 0
  %v777 = vsel %vm763, %v720, 0
  %v780 = vsel %vm763, %v721, 0
  %v783 = vsel %vm763, %v722, 0
  %v786 = vsel %vm763, %v723, 0
  %v789 = vsel %vm763, %v724, 0
  %v792 = vsel %vm763, %v725, 0
  %v795 = vsel %vm763, %v726, 0
  %v798 = vsel %vm763, %v727, 0
  %v801 = vsel %vm763, %v728, 0
  %v804 = vsel %vm763, %v729, 0
  %v807 = vsel %vm763, %v730, 0
  %v810 = vsel %vm763, %v731, 0
  %v813 = vsel %vm763, %v732, 0
  %v816 = vsel %vm763, %v733, 0
  %v819 = vsel %vm763, %v734, 0
  %v822 = vsel %vm763, %v735, 0
  %v825 = vsel %vm763, %v736, 0
  %v828 = vsel %vm763, %v737, 0
  %v831 = vsel %vm763, %v738, 0
  %v834 = vsel %vm763, %v739, 0
  %v837 = vsel %vm763, %v740, 0
  %v840 = vsel %vm763, %v741, 0
  %v843 = vsel %vm763, %v742, 0
  %v846 = vsel %vm763, %v743, 0
  %v849 = vsel %vm763, %v744, 0
  %v852 = vsel %vm763, %v745, 0
  %v855 = vsel %vm763, %v746, 0
  %v858 = vsel %vm763, %v747, 0
  %860 = vmatprep.subr.bf16.mxu0 0
  %861 = vmatpush1.bf16.msra.mxu0 %v761
  %862 = vmatprep.subr.bf16.mxu0 0
  %863 = vmatpush1.bf16.msra.mxu0 0
  %864 = vmatprep.subr.bf16.mxu0 0
  %865 = vmatpush1.bf16.msra.mxu0 0
  %866 = vmatprep.subr.bf16.mxu0 0
  %867 = vmatpush1.bf16.msra.mxu0 0
  %868 = vmatprep.subr.bf16.mxu0 0
  %869 = vmatpush1.bf16.msra.mxu0 0
  %870 = vmatprep.subr.bf16.mxu0 0
  %871 = vmatpush1.bf16.msra.mxu0 0
  %872 = vmatprep.subr.bf16.mxu0 0
  %873 = vmatpush1.bf16.msra.mxu0 0
  %874 = vmatprep.subr.bf16.mxu0 0
  %875 = vmatpush1.bf16.msra.mxu0 0
  %876 = vmatprep.subr.bf16.mxu0 0
  %877 = vmatpush1.bf16.msra.mxu0 0
  %878 = vmatprep.subr.bf16.mxu0 0
  %879 = vmatpush1.bf16.msra.mxu0 0
  %880 = vmatprep.subr.bf16.mxu0 0
  %881 = vmatpush1.bf16.msra.mxu0 0
  %882 = vmatprep.subr.bf16.mxu0 0
  %883 = vmatpush1.bf16.msra.mxu0 0
  %884 = vmatprep.subr.bf16.mxu0 0
  %885 = vmatpush1.bf16.msra.mxu0 0
  %886 = vmatprep.subr.bf16.mxu0 0
  %887 = vmatpush1.bf16.msra.mxu0 0
  %888 = vmatprep.subr.bf16.mxu0 0
  %889 = vmatpush1.bf16.msra.mxu0 0
  %890 = vmatprep.subr.bf16.mxu0 0
  %891 = vmatpush1.bf16.msra.mxu0 0
  %892 = vmatprep.mubr.bf16.mxu0 0
  %893 = vmatmul.mubr.bf16.gmra.mrb[0].mxu0 %v765
  %v894 = vpop.f32.mrb[0].mxu0
  %v895 = vadd.f32 %v755, %v894
  %v896 = vpop.f32.mrb[0].mxu0
  %v897 = vpop.f32.mrb[0].mxu0
  %v898 = vadd.f32 %v755, %v897
  %v899 = vpop.f32.mrb[0].mxu0
  %900 = vmatprep.mubr.bf16.mxu0 0
  %901 = vmatmul.mubr.bf16.gmra.mrb[0].mxu0 %v768
  %v902 = vpop.f32.mrb[0].mxu0
  %v903 = vadd.f32 %v755, %v902
  %v904 = vpop.f32.mrb[0].mxu0
  %v905 = vpop.f32.mrb[0].mxu0
  %v906 = vadd.f32 %v755, %v905
  %v907 = vpop.f32.mrb[0].mxu0
  %908 = vmatprep.mubr.bf16.mxu0 0
  %909 = vmatmul.mubr.bf16.gmra.mrb[0].mxu0 %v771
  %v910 = vpop.f32.mrb[0].mxu0
  %v911 = vadd.f32 %v755, %v910
  %v912 = vpop.f32.mrb[0].mxu0
  %v913 = vpop.f32.mrb[0].mxu0
  %v914 = vadd.f32 %v755, %v913
  %v915 = vpop.f32.mrb[0].mxu0
  %916 = vmatprep.mubr.bf16.mxu0 0
  %917 = vmatmul.mubr.bf16.gmra.mrb[0].mxu0 %v774
  %v918 = vpop.f32.mrb[0].mxu0
  %v919 = vadd.f32 %v755, %v918
  %v920 = vpop.f32.mrb[0].mxu0
  %v921 = vpop.f32.mrb[0].mxu0
  %v922 = vadd.f32 %v755, %v921
  %v923 = vpop.f32.mrb[0].mxu0
  %924 = vmatprep.mubr.bf16.mxu0 0
  %925 = vmatmul.mubr.bf16.gmra.mrb[0].mxu0 %v777
  %v926 = vpop.f32.mrb[0].mxu0
  %v927 = vadd.f32 %v755, %v926
  %v928 = vpop.f32.mrb[0].mxu0
  %v929 = vpop.f32.mrb[0].mxu0
  %v930 = vadd.f32 %v755, %v929
  %v931 = vpop.f32.mrb[0].mxu0
  %932 = vmatprep.mubr.bf16.mxu0 0
  %933 = vmatmul.mubr.bf16.gmra.mrb[0].mxu0 %v780
  %v934 = vpop.f32.mrb[0].mxu0
  %v935 = vadd.f32 %v755, %v934
  %v936 = vpop.f32.mrb[0].mxu0
  %v937 = vpop.f32.mrb[0].mxu0
  %v938 = vadd.f32 %v755, %v937
  %v939 = vpop.f32.mrb[0].mxu0
  %940 = vmatprep.mubr.bf16.mxu0 0
  %941 = vmatmul.mubr.bf16.gmra.mrb[0].mxu0 %v783
  %v942 = vpop.f32.mrb[0].mxu0
  %v943 = vadd.f32 %v755, %v942
  %v944 = vpop.f32.mrb[0].mxu0
  %v945 = vpop.f32.mrb[0].mxu0
  %v946 = vadd.f32 %v755, %v945
  %v947 = vpop.f32.mrb[0].mxu0
  %948 = vmatprep.mubr.bf16.mxu0 0
  %949 = vmatmul.mubr.bf16.gmra.mrb[0].mxu0 %v786
  %v950 = vpop.f32.mrb[0].mxu0
  %v951 = vadd.f32 %v755, %v950
  %v952 = vpop.f32.mrb[0].mxu0
  %v953 = vpop.f32.mrb[0].mxu0
  %v954 = vadd.f32 %v755, %v953
  %v955 = vpop.f32.mrb[0].mxu0
  %956 = vmatprep.mubr.bf16.mxu0 0
  %957 = vmatmul.mubr.bf16.gmra.mrb[0].mxu0 %v789
  %v958 = vpop.f32.mrb[0].mxu0
  %v959 = vadd.f32 %v755, %v958
  %v960 = vpop.f32.mrb[0].mxu0
  %v961 = vpop.f32.mrb[0].mxu0
  %v962 = vadd.f32 %v755, %v961
  %v963 = vpop.f32.mrb[0].mxu0
  %964 = vmatprep.mubr.bf16.mxu0 0
  %965 = vmatmul.mubr.bf16.gmra.mrb[0].mxu0 %v792
  %v966 = vpop.f32.mrb[0].mxu0
  %v967 = vadd.f32 %v755, %v966
  %v968 = vpop.f32.mrb[0].mxu0
  %v969 = vpop.f32.mrb[0].mxu0
  %v970 = vadd.f32 %v755, %v969
  %v971 = vpop.f32.mrb[0].mxu0
  %972 = vmatprep.mubr.bf16.mxu0 0
  %973 = vmatmul.mubr.bf16.gmra.mrb[0].mxu0 %v795
  %v974 = vpop.f32.mrb[0].mxu0
  %v975 = vadd.f32 %v755, %v974
  %v976 = vpop.f32.mrb[0].mxu0
  %v977 = vpop.f32.mrb[0].mxu0
  %v978 = vadd.f32 %v755, %v977
  %v979 = vpop.f32.mrb[0].mxu0
  %980 = vmatprep.mubr.bf16.mxu0 0
  %981 = vmatmul.mubr.bf16.gmra.mrb[0].mxu0 %v798
  %v982 = vpop.f32.mrb[0].mxu0
  %v983 = vadd.f32 %v755, %v982
  %v984 = vpop.f32.mrb[0].mxu0
  %v985 = vpop.f32.mrb[0].mxu0
  %v986 = vadd.f32 %v755, %v985
  %v987 = vpop.f32.mrb[0].mxu0
  %988 = vmatprep.mubr.bf16.mxu0 0
  %989 = vmatmul.mubr.bf16.gmra.mrb[0].mxu0 %v801
  %v990 = vpop.f32.mrb[0].mxu0
  %v991 = vadd.f32 %v755, %v990
  %v992 = vpop.f32.mrb[0].mxu0
  %v993 = vpop.f32.mrb[0].mxu0
  %v994 = vadd.f32 %v755, %v993
  %v995 = vpop.f32.mrb[0].mxu0
  %996 = vmatprep.mubr.bf16.mxu0 0
  %997 = vmatmul.mubr.bf16.gmra.mrb[0].mxu0 %v804
  %v998 = vpop.f32.mrb[0].mxu0
  %v999 = vadd.f32 %v755, %v998
  %v1000 = vpop.f32.mrb[0].mxu0
  %v1001 = vpop.f32.mrb[0].mxu0
  %v1002 = vadd.f32 %v755, %v1001
  %v1003 = vpop.f32.mrb[0].mxu0
  %1004 = vmatprep.mubr.bf16.mxu0 0
  %1005 = vmatmul.mubr.bf16.gmra.mrb[0].mxu0 %v807
  %v1006 = vpop.f32.mrb[0].mxu0
  %v1007 = vadd.f32 %v755, %v1006
  %v1008 = vpop.f32.mrb[0].mxu0
  %v1009 = vpop.f32.mrb[0].mxu0
  %v1010 = vadd.f32 %v755, %v1009
  %v1011 = vpop.f32.mrb[0].mxu0
  %1012 = vmatprep.mubr.bf16.mxu0 0
  %1013 = vmatmul.mubr.bf16.gmra.mrb[0].mxu0 %v810
  %v1014 = vpop.f32.mrb[0].mxu0
  %v1015 = vadd.f32 %v755, %v1014
  %v1016 = vpop.f32.mrb[0].mxu0
  %v1017 = vpop.f32.mrb[0].mxu0
  %v1018 = vadd.f32 %v755, %v1017
  %v1019 = vpop.f32.mrb[0].mxu0
  %1020 = vmatprep.mubr.bf16.mxu0 0
  %1021 = vmatmul.mubr.bf16.gmra.mrb[0].mxu0 %v813
  %v1022 = vpop.f32.mrb[0].mxu0
  %v1023 = vadd.f32 %v755, %v1022
  %v1024 = vpop.f32.mrb[0].mxu0
  %v1025 = vpop.f32.mrb[0].mxu0
  %v1026 = vadd.f32 %v755, %v1025
  %v1027 = vpop.f32.mrb[0].mxu0
  %1028 = vmatprep.mubr.bf16.mxu0 0
  %1029 = vmatmul.mubr.bf16.gmra.mrb[0].mxu0 %v816
  %v1030 = vpop.f32.mrb[0].mxu0
  %v1031 = vadd.f32 %v755, %v1030
  %v1032 = vpop.f32.mrb[0].mxu0
  %v1033 = vpop.f32.mrb[0].mxu0
  %v1034 = vadd.f32 %v755, %v1033
  %v1035 = vpop.f32.mrb[0].mxu0
  %1036 = vmatprep.mubr.bf16.mxu0 0
  %1037 = vmatmul.mubr.bf16.gmra.mrb[0].mxu0 %v819
  %v1038 = vpop.f32.mrb[0].mxu0
  %v1039 = vadd.f32 %v755, %v1038
  %v1040 = vpop.f32.mrb[0].mxu0
  %v1041 = vpop.f32.mrb[0].mxu0
  %v1042 = vadd.f32 %v755, %v1041
  %v1043 = vpop.f32.mrb[0].mxu0
  %1044 = vmatprep.mubr.bf16.mxu0 0
  %1045 = vmatmul.mubr.bf16.gmra.mrb[0].mxu0 %v822
  %v1046 = vpop.f32.mrb[0].mxu0
  %v1047 = vadd.f32 %v755, %v1046
  %v1048 = vpop.f32.mrb[0].mxu0
  %v1049 = vpop.f32.mrb[0].mxu0
  %v1050 = vadd.f32 %v755, %v1049
  %v1051 = vpop.f32.mrb[0].mxu0
  %1052 = vmatprep.mubr.bf16.mxu0 0
  %1053 = vmatmul.mubr.bf16.gmra.mrb[0].mxu0 %v825
  %v1054 = vpop.f32.mrb[0].mxu0
  %v1055 = vadd.f32 %v755, %v1054
  %v1056 = vpop.f32.mrb[0].mxu0
  %v1057 = vpop.f32.mrb[0].mxu0
  %v1058 = vadd.f32 %v755, %v1057
  %v1059 = vpop.f32.mrb[0].mxu0
  %1060 = vmatprep.mubr.bf16.mxu0 0
  %1061 = vmatmul.mubr.bf16.gmra.mrb[0].mxu0 %v828
  %v1062 = vpop.f32.mrb[0].mxu0
  %v1063 = vadd.f32 %v755, %v1062
  %v1064 = vpop.f32.mrb[0].mxu0
  %v1065 = vpop.f32.mrb[0].mxu0
  %v1066 = vadd.f32 %v755, %v1065
  %v1067 = vpop.f32.mrb[0].mxu0
  %1068 = vmatprep.mubr.bf16.mxu0 0
  %1069 = vmatmul.mubr.bf16.gmra.mrb[0].mxu0 %v831
  %v1070 = vpop.f32.mrb[0].mxu0
  %v1071 = vadd.f32 %v755, %v1070
  %v1072 = vpop.f32.mrb[0].mxu0
  %v1073 = vpop.f32.mrb[0].mxu0
  %v1074 = vadd.f32 %v755, %v1073
  %v1075 = vpop.f32.mrb[0].mxu0
  %1076 = vmatprep.mubr.bf16.mxu0 0
  %1077 = vmatmul.mubr.bf16.gmra.mrb[0].mxu0 %v834
  %v1078 = vpop.f32.mrb[0].mxu0
  %v1079 = vadd.f32 %v755, %v1078
  %v1080 = vpop.f32.mrb[0].mxu0
  %v1081 = vpop.f32.mrb[0].mxu0
  %v1082 = vadd.f32 %v755, %v1081
  %v1083 = vpop.f32.mrb[0].mxu0
  %1084 = vmatprep.mubr.bf16.mxu0 0
  %1085 = vmatmul.mubr.bf16.gmra.mrb[0].mxu0 %v837
  %v1086 = vpop.f32.mrb[0].mxu0
  %v1087 = vadd.f32 %v755, %v1086
  %v1088 = vpop.f32.mrb[0].mxu0
  %v1089 = vpop.f32.mrb[0].mxu0
  %v1090 = vadd.f32 %v755, %v1089
  %v1091 = vpop.f32.mrb[0].mxu0
  %1092 = vmatprep.mubr.bf16.mxu0 0
  %1093 = vmatmul.mubr.bf16.gmra.mrb[0].mxu0 %v840
  %v1094 = vpop.f32.mrb[0].mxu0
  %v1095 = vadd.f32 %v755, %v1094
  %v1096 = vpop.f32.mrb[0].mxu0
  %v1097 = vpop.f32.mrb[0].mxu0
  %v1098 = vadd.f32 %v755, %v1097
  %v1099 = vpop.f32.mrb[0].mxu0
  %1100 = vmatprep.mubr.bf16.mxu0 0
  %1101 = vmatmul.mubr.bf16.gmra.mrb[0].mxu0 %v843
  %v1102 = vpop.f32.mrb[0].mxu0
  %v1103 = vadd.f32 %v755, %v1102
  %v1104 = vpop.f32.mrb[0].mxu0
  %v1105 = vpop.f32.mrb[0].mxu0
  %v1106 = vadd.f32 %v755, %v1105
  %v1107 = vpop.f32.mrb[0].mxu0
  %1108 = vmatprep.mubr.bf16.mxu0 0
  %1109 = vmatmul.mubr.bf16.gmra.mrb[0].mxu0 %v846
  %v1110 = vpop.f32.mrb[0].mxu0
  %v1111 = vadd.f32 %v755, %v1110
  %v1112 = vpop.f32.mrb[0].mxu0
  %v1113 = vpop.f32.mrb[0].mxu0
  %v1114 = vadd.f32 %v755, %v1113
  %v1115 = vpop.f32.mrb[0].mxu0
  %1116 = vmatprep.mubr.bf16.mxu0 0
  %1117 = vmatmul.mubr.bf16.gmra.mrb[0].mxu0 %v849
  %v1118 = vpop.f32.mrb[0].mxu0
  %v1119 = vadd.f32 %v755, %v1118
  %v1120 = vpop.f32.mrb[0].mxu0
  %v1121 = vpop.f32.mrb[0].mxu0
  %v1122 = vadd.f32 %v755, %v1121
  %v1123 = vpop.f32.mrb[0].mxu0
  %1124 = vmatprep.mubr.bf16.mxu0 0
  %1125 = vmatmul.mubr.bf16.gmra.mrb[0].mxu0 %v852
  %v1126 = vpop.f32.mrb[0].mxu0
  %v1127 = vadd.f32 %v755, %v1126
  %v1128 = vpop.f32.mrb[0].mxu0
  %v1129 = vpop.f32.mrb[0].mxu0
  %v1130 = vadd.f32 %v755, %v1129
  %v1131 = vpop.f32.mrb[0].mxu0
  %1132 = vmatprep.mubr.bf16.mxu0 0
  %1133 = vmatmul.mubr.bf16.gmra.mrb[0].mxu0 %v855
  %v1134 = vpop.f32.mrb[0].mxu0
  %v1135 = vadd.f32 %v755, %v1134
  %v1136 = vpop.f32.mrb[0].mxu0
  %v1137 = vpop.f32.mrb[0].mxu0
  %v1138 = vadd.f32 %v755, %v1137
  %v1139 = vpop.f32.mrb[0].mxu0
  %1140 = vmatprep.mubr.bf16.mxu0 0
  %1141 = vmatmul.mubr.bf16.gmra.mrb[0].mxu0 %v858
  %v1142 = vpop.f32.mrb[0].mxu0
  %v1143 = vadd.f32 %v755, %v1142
  %v1144 = vpop.f32.mrb[0].mxu0
  %v1145 = vpop.f32.mrb[0].mxu0
  %v1146 = vadd.f32 %v755, %v1145
  %v1147 = vpop.f32.mrb[0].mxu0
  %1148 = vdwg.mxu0
  %v1149 = vmax.f32 %v895, 0.0
  %v1150 = vmax.f32 %v898, 0.0
  %v1151 = vmax.f32 %v903, 0.0
  %v1152 = vmax.f32 %v906, 0.0
  %v1153 = vmax.f32 %v911, 0.0
  %v1154 = vmax.f32 %v914, 0.0
  %v1155 = vmax.f32 %v919, 0.0
  %v1156 = vmax.f32 %v922, 0.0
  %v1157 = vmax.f32 %v927, 0.0
  %v1158 = vmax.f32 %v930, 0.0
  %v1159 = vmax.f32 %v935, 0.0
  %v1160 = vmax.f32 %v938, 0.0
  %v1161 = vmax.f32 %v943, 0.0
  %v1162 = vmax.f32 %v946, 0.0
  %v1163 = vmax.f32 %v951, 0.0
  %v1164 = vmax.f32 %v954, 0.0
  %v1165 = vmax.f32 %v959, 0.0
  %v1166 = vmax.f32 %v962, 0.0
  %v1167 = vmax.f32 %v967, 0.0
  %v1168 = vmax.f32 %v970, 0.0
  %v1169 = vmax.f32 %v975, 0.0
  %v1170 = vmax.f32 %v978, 0.0
  %v1171 = vmax.f32 %v983, 0.0
  %v1172 = vmax.f32 %v986, 0.0
  %v1173 = vmax.f32 %v991, 0.0
  %v1174 = vmax.f32 %v994, 0.0
  %v1175 = vmax.f32 %v999, 0.0
  %v1176 = vmax.f32 %v1002, 0.0
  %v1177 = vmax.f32 %v1007, 0.0
  %v1178 = vmax.f32 %v1010, 0.0
  %v1179 = vmax.f32 %v1015, 0.0
  %v1180 = vmax.f32 %v1018, 0.0
  %v1181 = vmax.f32 %v1023, 0.0
  %v1182 = vmax.f32 %v1026, 0.0
  %v1183 = vmax.f32 %v1031, 0.0
  %v1184 = vmax.f32 %v1034, 0.0
  %v1185 = vmax.f32 %v1039, 0.0
  %v1186 = vmax.f32 %v1042, 0.0
  %v1187 = vmax.f32 %v1047, 0.0
  %v1188 = vmax.f32 %v1050, 0.0
  %v1189 = vmax.f32 %v1055, 0.0
  %v1190 = vmax.f32 %v1058, 0.0
  %v1191 = vmax.f32 %v1063, 0.0
  %v1192 = vmax.f32 %v1066, 0.0
  %v1193 = vmax.f32 %v1071, 0.0
  %v1194 = vmax.f32 %v1074, 0.0
  %v1195 = vmax.f32 %v1079, 0.0
  %v1196 = vmax.f32 %v1082, 0.0
  %v1197 = vmax.f32 %v1087, 0.0
  %v1198 = vmax.f32 %v1090, 0.0
  %v1199 = vmax.f32 %v1095, 0.0
  %v1200 = vmax.f32 %v1098, 0.0
  %v1201 = vmax.f32 %v1103, 0.0
  %v1202 = vmax.f32 %v1106, 0.0
  %v1203 = vmax.f32 %v1111, 0.0
  %v1204 = vmax.f32 %v1114, 0.0
  %v1205 = vmax.f32 %v1119, 0.0
  %v1206 = vmax.f32 %v1122, 0.0
  %v1207 = vmax.f32 %v1127, 0.0
  %v1208 = vmax.f32 %v1130, 0.0
  %v1209 = vmax.f32 %v1135, 0.0
  %v1210 = vmax.f32 %v1138, 0.0
  %v1211 = vmax.f32 %v1143, 0.0
  %v1212 = vmax.f32 %v1146, 0.0
  %v1213 = vpack.c.bf16 %v1150, %v1149
  %v1214 = vpack.c.bf16 %v1152, %v1151
  %v1215 = vpack.c.bf16 %v1154, %v1153
  %v1216 = vpack.c.bf16 %v1156, %v1155
  %v1217 = vpack.c.bf16 %v1158, %v1157
  %v1218 = vpack.c.bf16 %v1160, %v1159
  %v1219 = vpack.c.bf16 %v1162, %v1161
  %v1220 = vpack.c.bf16 %v1164, %v1163
  %v1221 = vpack.c.bf16 %v1166, %v1165
  %v1222 = vpack.c.bf16 %v1168, %v1167
  %v1223 = vpack.c.bf16 %v1170, %v1169
  %v1224 = vpack.c.bf16 %v1172, %v1171
  %v1225 = vpack.c.bf16 %v1174, %v1173
  %v1226 = vpack.c.bf16 %v1176, %v1175
  %v1227 = vpack.c.bf16 %v1178, %v1177
  %v1228 = vpack.c.bf16 %v1180, %v1179
  %v1229 = vpack.c.bf16 %v1182, %v1181
  %v1230 = vpack.c.bf16 %v1184, %v1183
  %v1231 = vpack.c.bf16 %v1186, %v1185
  %v1232 = vpack.c.bf16 %v1188, %v1187
  %v1233 = vpack.c.bf16 %v1190, %v1189
  %v1234 = vpack.c.bf16 %v1192, %v1191
  %v1235 = vpack.c.bf16 %v1194, %v1193
  %v1236 = vpack.c.bf16 %v1196, %v1195
  %v1237 = vpack.c.bf16 %v1198, %v1197
  %v1238 = vpack.c.bf16 %v1200, %v1199
  %v1239 = vpack.c.bf16 %v1202, %v1201
  %v1240 = vpack.c.bf16 %v1204, %v1203
  %v1241 = vpack.c.bf16 %v1206, %v1205
  %v1242 = vpack.c.bf16 %v1208, %v1207
  %v1243 = vpack.c.bf16 %v1210, %v1209
  %v1244 = vpack.c.bf16 %v1212, %v1211
  %v1245 = vld [vmem:[%s3] sm:$0xf]
  %v1246 = vld [vmem:[%s3 + $0x4] sm:$0xf]
  %v1247 = vld [vmem:[%s3 + $0x8] sm:$0xf]
  %v1248 = vld [vmem:[%s3 + $0xc] sm:$0xf]
  %v1249 = vld [vmem:[%s6] sm:$0x1]
  %v1251 = vlaneseq
  %v1252 = vshrl.u32 %v1251, 7
  %v1253 = vsub.s32 0, %v1252
  %v1254 = vrot.slane %v1249, %v1253
  %v1260 = vunpack.c.l.b16 %v1245
  %v1261 = vunpack.c.l.b16 %v1246
  %v1262 = vunpack.c.l.b16 %v1247
  %v1263 = vunpack.c.l.b16 %v1248
  %v1264 = vpack.c.b16 %v1261, %v1260
  %v1265 = vpack.c.b16 %v1263, %v1262
  %vm1268 = vcmask 261120
  %v1270 = vsel %vm1268, %v1213, 0
  %v1273 = vsel %vm1268, %v1214, 0
  %v1276 = vsel %vm1268, %v1215, 0
  %v1279 = vsel %vm1268, %v1216, 0
  %v1282 = vsel %vm1268, %v1217, 0
  %v1285 = vsel %vm1268, %v1218, 0
  %v1288 = vsel %vm1268, %v1219, 0
  %v1291 = vsel %vm1268, %v1220, 0
  %v1294 = vsel %vm1268, %v1221, 0
  %v1297 = vsel %vm1268, %v1222, 0
  %v1300 = vsel %vm1268, %v1223, 0
  %v1303 = vsel %vm1268, %v1224, 0
  %v1306 = vsel %vm1268, %v1225, 0
  %v1309 = vsel %vm1268, %v1226, 0
  %v1312 = vsel %vm1268, %v1227, 0
  %v1315 = vsel %vm1268, %v1228, 0
  %v1318 = vsel %vm1268, %v1229, 0
  %v1321 = vsel %vm1268, %v1230, 0
  %v1324 = vsel %vm1268, %v1231, 0
  %v1327 = vsel %vm1268, %v1232, 0
  %v1330 = vsel %vm1268, %v1233, 0
  %v1333 = vsel %vm1268, %v1234, 0
  %v1336 = vsel %vm1268, %v1235, 0
  %v1339 = vsel %vm1268, %v1236, 0
  %v1342 = vsel %vm1268, %v1237, 0
  %v1345 = vsel %vm1268, %v1238, 0
  %v1348 = vsel %vm1268, %v1239, 0
  %v1351 = vsel %vm1268, %v1240, 0
  %v1354 = vsel %vm1268, %v1241, 0
  %v1357 = vsel %vm1268, %v1242, 0
  %v1360 = vsel %vm1268, %v1243, 0
  %v1363 = vsel %vm1268, %v1244, 0
  %1365 = vmatprep.subr.bf16.mxu0 0
  %1366 = vmatpush1.bf16.msra.mxu0 %v1264
  %1367 = vmatprep.subr.bf16.mxu0 0
  %1368 = vmatpush1.bf16.msra.mxu0 %v1265
  %1369 = vmatprep.subr.bf16.mxu0 0
  %1370 = vmatpush1.bf16.msra.mxu0 0
  %1371 = vmatprep.subr.bf16.mxu0 0
  %1372 = vmatpush1.bf16.msra.mxu0 0
  %1373 = vmatprep.subr.bf16.mxu0 0
  %1374 = vmatpush1.bf16.msra.mxu0 0
  %1375 = vmatprep.subr.bf16.mxu0 0
  %1376 = vmatpush1.bf16.msra.mxu0 0
  %1377 = vmatprep.subr.bf16.mxu0 0
  %1378 = vmatpush1.bf16.msra.mxu0 0
  %1379 = vmatprep.subr.bf16.mxu0 0
  %1380 = vmatpush1.bf16.msra.mxu0 0
  %1381 = vmatprep.subr.bf16.mxu0 0
  %1382 = vmatpush1.bf16.msra.mxu0 0
  %1383 = vmatprep.subr.bf16.mxu0 0
  %1384 = vmatpush1.bf16.msra.mxu0 0
  %1385 = vmatprep.subr.bf16.mxu0 0
  %1386 = vmatpush1.bf16.msra.mxu0 0
  %1387 = vmatprep.subr.bf16.mxu0 0
  %1388 = vmatpush1.bf16.msra.mxu0 0
  %1389 = vmatprep.subr.bf16.mxu0 0
  %1390 = vmatpush1.bf16.msra.mxu0 0
  %1391 = vmatprep.subr.bf16.mxu0 0
  %1392 = vmatpush1.bf16.msra.mxu0 0
  %1393 = vmatprep.subr.bf16.mxu0 0
  %1394 = vmatpush1.bf16.msra.mxu0 0
  %1395 = vmatprep.subr.bf16.mxu0 0
  %1396 = vmatpush1.bf16.msra.mxu0 0
  %1397 = vmatprep.mubr.bf16.mxu0 0
  %1398 = vmatmul.mubr.bf16.gmra.mrb[0].mxu0 %v1270
  %v1399 = vpop.f32.mrb[0].mxu0
  %v1400 = vadd.f32 %v1254, %v1399
  %v1401 = vpop.f32.mrb[0].mxu0
  %v1402 = vpop.f32.mrb[0].mxu0
  %v1403 = vadd.f32 %v1254, %v1402
  %v1404 = vpop.f32.mrb[0].mxu0
  %1405 = vmatprep.mubr.bf16.mxu0 0
  %1406 = vmatmul.mubr.bf16.gmra.mrb[0].mxu0 %v1273
  %v1407 = vpop.f32.mrb[0].mxu0
  %v1408 = vadd.f32 %v1254, %v1407
  %v1409 = vpop.f32.mrb[0].mxu0
  %v1410 = vpop.f32.mrb[0].mxu0
  %v1411 = vadd.f32 %v1254, %v1410
  %v1412 = vpop.f32.mrb[0].mxu0
  %1413 = vmatprep.mubr.bf16.mxu0 0
  %1414 = vmatmul.mubr.bf16.gmra.mrb[0].mxu0 %v1276
  %v1415 = vpop.f32.mrb[0].mxu0
  %v1416 = vadd.f32 %v1254, %v1415
  %v1417 = vpop.f32.mrb[0].mxu0
  %v1418 = vpop.f32.mrb[0].mxu0
  %v1419 = vadd.f32 %v1254, %v1418
  %v1420 = vpop.f32.mrb[0].mxu0
  %1421 = vmatprep.mubr.bf16.mxu0 0
  %1422 = vmatmul.mubr.bf16.gmra.mrb[0].mxu0 %v1279
  %v1423 = vpop.f32.mrb[0].mxu0
  %v1424 = vadd.f32 %v1254, %v1423
  %v1425 = vpop.f32.mrb[0].mxu0
  %v1426 = vpop.f32.mrb[0].mxu0
  %v1427 = vadd.f32 %v1254, %v1426
  %v1428 = vpop.f32.mrb[0].mxu0
  %1429 = vmatprep.mubr.bf16.mxu0 0
  %1430 = vmatmul.mubr.bf16.gmra.mrb[0].mxu0 %v1282
  %v1431 = vpop.f32.mrb[0].mxu0
  %v1432 = vadd.f32 %v1254, %v1431
  %v1433 = vpop.f32.mrb[0].mxu0
  %v1434 = vpop.f32.mrb[0].mxu0
  %v1435 = vadd.f32 %v1254, %v1434
  %v1436 = vpop.f32.mrb[0].mxu0
  %1437 = vmatprep.mubr.bf16.mxu0 0
  %1438 = vmatmul.mubr.bf16.gmra.mrb[0].mxu0 %v1285
  %v1439 = vpop.f32.mrb[0].mxu0
  %v1440 = vadd.f32 %v1254, %v1439
  %v1441 = vpop.f32.mrb[0].mxu0
  %v1442 = vpop.f32.mrb[0].mxu0
  %v1443 = vadd.f32 %v1254, %v1442
  %v1444 = vpop.f32.mrb[0].mxu0
  %1445 = vmatprep.mubr.bf16.mxu0 0
  %1446 = vmatmul.mubr.bf16.gmra.mrb[0].mxu0 %v1288
  %v1447 = vpop.f32.mrb[0].mxu0
  %v1448 = vadd.f32 %v1254, %v1447
  %v1449 = vpop.f32.mrb[0].mxu0
  %v1450 = vpop.f32.mrb[0].mxu0
  %v1451 = vadd.f32 %v1254, %v1450
  %v1452 = vpop.f32.mrb[0].mxu0
  %1453 = vmatprep.mubr.bf16.mxu0 0
  %1454 = vmatmul.mubr.bf16.gmra.mrb[0].mxu0 %v1291
  %v1455 = vpop.f32.mrb[0].mxu0
  %v1456 = vadd.f32 %v1254, %v1455
  %v1457 = vpop.f32.mrb[0].mxu0
  %v1458 = vpop.f32.mrb[0].mxu0
  %v1459 = vadd.f32 %v1254, %v1458
  %v1460 = vpop.f32.mrb[0].mxu0
  %1461 = vmatprep.mubr.bf16.mxu0 0
  %1462 = vmatmul.mubr.bf16.gmra.mrb[0].mxu0 %v1294
  %v1463 = vpop.f32.mrb[0].mxu0
  %v1464 = vadd.f32 %v1254, %v1463
  %v1465 = vpop.f32.mrb[0].mxu0
  %v1466 = vpop.f32.mrb[0].mxu0
  %v1467 = vadd.f32 %v1254, %v1466
  %v1468 = vpop.f32.mrb[0].mxu0
  %1469 = vmatprep.mubr.bf16.mxu0 0
  %1470 = vmatmul.mubr.bf16.gmra.mrb[0].mxu0 %v1297
  %v1471 = vpop.f32.mrb[0].mxu0
  %v1472 = vadd.f32 %v1254, %v1471
  %v1473 = vpop.f32.mrb[0].mxu0
  %v1474 = vpop.f32.mrb[0].mxu0
  %v1475 = vadd.f32 %v1254, %v1474
  %v1476 = vpop.f32.mrb[0].mxu0
  %1477 = vmatprep.mubr.bf16.mxu0 0
  %1478 = vmatmul.mubr.bf16.gmra.mrb[0].mxu0 %v1300
  %v1479 = vpop.f32.mrb[0].mxu0
  %v1480 = vadd.f32 %v1254, %v1479
  %v1481 = vpop.f32.mrb[0].mxu0
  %v1482 = vpop.f32.mrb[0].mxu0
  %v1483 = vadd.f32 %v1254, %v1482
  %v1484 = vpop.f32.mrb[0].mxu0
  %1485 = vmatprep.mubr.bf16.mxu0 0
  %1486 = vmatmul.mubr.bf16.gmra.mrb[0].mxu0 %v1303
  %v1487 = vpop.f32.mrb[0].mxu0
  %v1488 = vadd.f32 %v1254, %v1487
  %v1489 = vpop.f32.mrb[0].mxu0
  %v1490 = vpop.f32.mrb[0].mxu0
  %v1491 = vadd.f32 %v1254, %v1490
  %v1492 = vpop.f32.mrb[0].mxu0
  %1493 = vmatprep.mubr.bf16.mxu0 0
  %1494 = vmatmul.mubr.bf16.gmra.mrb[0].mxu0 %v1306
  %v1495 = vpop.f32.mrb[0].mxu0
  %v1496 = vadd.f32 %v1254, %v1495
  %v1497 = vpop.f32.mrb[0].mxu0
  %v1498 = vpop.f32.mrb[0].mxu0
  %v1499 = vadd.f32 %v1254, %v1498
  %v1500 = vpop.f32.mrb[0].mxu0
  %1501 = vmatprep.mubr.bf16.mxu0 0
  %1502 = vmatmul.mubr.bf16.gmra.mrb[0].mxu0 %v1309
  %v1503 = vpop.f32.mrb[0].mxu0
  %v1504 = vadd.f32 %v1254, %v1503
  %v1505 = vpop.f32.mrb[0].mxu0
  %v1506 = vpop.f32.mrb[0].mxu0
  %v1507 = vadd.f32 %v1254, %v1506
  %v1508 = vpop.f32.mrb[0].mxu0
  %1509 = vmatprep.mubr.bf16.mxu0 0
  %1510 = vmatmul.mubr.bf16.gmra.mrb[0].mxu0 %v1312
  %v1511 = vpop.f32.mrb[0].mxu0
  %v1512 = vadd.f32 %v1254, %v1511
  %v1513 = vpop.f32.mrb[0].mxu0
  %v1514 = vpop.f32.mrb[0].mxu0
  %v1515 = vadd.f32 %v1254, %v1514
  %v1516 = vpop.f32.mrb[0].mxu0
  %1517 = vmatprep.mubr.bf16.mxu0 0
  %1518 = vmatmul.mubr.bf16.gmra.mrb[0].mxu0 %v1315
  %v1519 = vpop.f32.mrb[0].mxu0
  %v1520 = vadd.f32 %v1254, %v1519
  %v1521 = vpop.f32.mrb[0].mxu0
  %v1522 = vpop.f32.mrb[0].mxu0
  %v1523 = vadd.f32 %v1254, %v1522
  %v1524 = vpop.f32.mrb[0].mxu0
  %1525 = vmatprep.mubr.bf16.mxu0 0
  %1526 = vmatmul.mubr.bf16.gmra.mrb[0].mxu0 %v1318
  %v1527 = vpop.f32.mrb[0].mxu0
  %v1528 = vadd.f32 %v1254, %v1527
  %v1529 = vpop.f32.mrb[0].mxu0
  %v1530 = vpop.f32.mrb[0].mxu0
  %v1531 = vadd.f32 %v1254, %v1530
  %v1532 = vpop.f32.mrb[0].mxu0
  %1533 = vmatprep.mubr.bf16.mxu0 0
  %1534 = vmatmul.mubr.bf16.gmra.mrb[0].mxu0 %v1321
  %v1535 = vpop.f32.mrb[0].mxu0
  %v1536 = vadd.f32 %v1254, %v1535
  %v1537 = vpop.f32.mrb[0].mxu0
  %v1538 = vpop.f32.mrb[0].mxu0
  %v1539 = vadd.f32 %v1254, %v1538
  %v1540 = vpop.f32.mrb[0].mxu0
  %1541 = vmatprep.mubr.bf16.mxu0 0
  %1542 = vmatmul.mubr.bf16.gmra.mrb[0].mxu0 %v1324
  %v1543 = vpop.f32.mrb[0].mxu0
  %v1544 = vadd.f32 %v1254, %v1543
  %v1545 = vpop.f32.mrb[0].mxu0
  %v1546 = vpop.f32.mrb[0].mxu0
  %v1547 = vadd.f32 %v1254, %v1546
  %v1548 = vpop.f32.mrb[0].mxu0
  %1549 = vmatprep.mubr.bf16.mxu0 0
  %1550 = vmatmul.mubr.bf16.gmra.mrb[0].mxu0 %v1327
  %v1551 = vpop.f32.mrb[0].mxu0
  %v1552 = vadd.f32 %v1254, %v1551
  %v1553 = vpop.f32.mrb[0].mxu0
  %v1554 = vpop.f32.mrb[0].mxu0
  %v1555 = vadd.f32 %v1254, %v1554
  %v1556 = vpop.f32.mrb[0].mxu0
  %1557 = vmatprep.mubr.bf16.mxu0 0
  %1558 = vmatmul.mubr.bf16.gmra.mrb[0].mxu0 %v1330
  %v1559 = vpop.f32.mrb[0].mxu0
  %v1560 = vadd.f32 %v1254, %v1559
  %v1561 = vpop.f32.mrb[0].mxu0
  %v1562 = vpop.f32.mrb[0].mxu0
  %v1563 = vadd.f32 %v1254, %v1562
  %v1564 = vpop.f32.mrb[0].mxu0
  %1565 = vmatprep.mubr.bf16.mxu0 0
  %1566 = vmatmul.mubr.bf16.gmra.mrb[0].mxu0 %v1333
  %v1567 = vpop.f32.mrb[0].mxu0
  %v1568 = vadd.f32 %v1254, %v1567
  %v1569 = vpop.f32.mrb[0].mxu0
  %v1570 = vpop.f32.mrb[0].mxu0
  %v1571 = vadd.f32 %v1254, %v1570
  %v1572 = vpop.f32.mrb[0].mxu0
  %1573 = vmatprep.mubr.bf16.mxu0 0
  %1574 = vmatmul.mubr.bf16.gmra.mrb[0].mxu0 %v1336
  %v1575 = vpop.f32.mrb[0].mxu0
  %v1576 = vadd.f32 %v1254, %v1575
  %v1577 = vpop.f32.mrb[0].mxu0
  %v1578 = vpop.f32.mrb[0].mxu0
  %v1579 = vadd.f32 %v1254, %v1578
  %v1580 = vpop.f32.mrb[0].mxu0
  %1581 = vmatprep.mubr.bf16.mxu0 0
  %1582 = vmatmul.mubr.bf16.gmra.mrb[0].mxu0 %v1339
  %v1583 = vpop.f32.mrb[0].mxu0
  %v1584 = vadd.f32 %v1254, %v1583
  %v1585 = vpop.f32.mrb[0].mxu0
  %v1586 = vpop.f32.mrb[0].mxu0
  %v1587 = vadd.f32 %v1254, %v1586
  %v1588 = vpop.f32.mrb[0].mxu0
  %1589 = vmatprep.mubr.bf16.mxu0 0
  %1590 = vmatmul.mubr.bf16.gmra.mrb[0].mxu0 %v1342
  %v1591 = vpop.f32.mrb[0].mxu0
  %v1592 = vadd.f32 %v1254, %v1591
  %v1593 = vpop.f32.mrb[0].mxu0
  %v1594 = vpop.f32.mrb[0].mxu0
  %v1595 = vadd.f32 %v1254, %v1594
  %v1596 = vpop.f32.mrb[0].mxu0
  %1597 = vmatprep.mubr.bf16.mxu0 0
  %1598 = vmatmul.mubr.bf16.gmra.mrb[0].mxu0 %v1345
  %v1599 = vpop.f32.mrb[0].mxu0
  %v1600 = vadd.f32 %v1254, %v1599
  %v1601 = vpop.f32.mrb[0].mxu0
  %v1602 = vpop.f32.mrb[0].mxu0
  %v1603 = vadd.f32 %v1254, %v1602
  %v1604 = vpop.f32.mrb[0].mxu0
  %1605 = vmatprep.mubr.bf16.mxu0 0
  %1606 = vmatmul.mubr.bf16.gmra.mrb[0].mxu0 %v1348
  %v1607 = vpop.f32.mrb[0].mxu0
  %v1608 = vadd.f32 %v1254, %v1607
  %v1609 = vpop.f32.mrb[0].mxu0
  %v1610 = vpop.f32.mrb[0].mxu0
  %v1611 = vadd.f32 %v1254, %v1610
  %v1612 = vpop.f32.mrb[0].mxu0
  %1613 = vmatprep.mubr.bf16.mxu0 0
  %1614 = vmatmul.mubr.bf16.gmra.mrb[0].mxu0 %v1351
  %v1615 = vpop.f32.mrb[0].mxu0
  %v1616 = vadd.f32 %v1254, %v1615
  %v1617 = vpop.f32.mrb[0].mxu0
  %v1618 = vpop.f32.mrb[0].mxu0
  %v1619 = vadd.f32 %v1254, %v1618
  %v1620 = vpop.f32.mrb[0].mxu0
  %1621 = vmatprep.mubr.bf16.mxu0 0
  %1622 = vmatmul.mubr.bf16.gmra.mrb[0].mxu0 %v1354
  %v1623 = vpop.f32.mrb[0].mxu0
  %v1624 = vadd.f32 %v1254, %v1623
  %v1625 = vpop.f32.mrb[0].mxu0
  %v1626 = vpop.f32.mrb[0].mxu0
  %v1627 = vadd.f32 %v1254, %v1626
  %v1628 = vpop.f32.mrb[0].mxu0
  %1629 = vmatprep.mubr.bf16.mxu0 0
  %1630 = vmatmul.mubr.bf16.gmra.mrb[0].mxu0 %v1357
  %v1631 = vpop.f32.mrb[0].mxu0
  %v1632 = vadd.f32 %v1254, %v1631
  %v1633 = vpop.f32.mrb[0].mxu0
  %v1634 = vpop.f32.mrb[0].mxu0
  %v1635 = vadd.f32 %v1254, %v1634
  %v1636 = vpop.f32.mrb[0].mxu0
  %1637 = vmatprep.mubr.bf16.mxu0 0
  %1638 = vmatmul.mubr.bf16.gmra.mrb[0].mxu0 %v1360
  %v1639 = vpop.f32.mrb[0].mxu0
  %v1640 = vadd.f32 %v1254, %v1639
  %v1641 = vpop.f32.mrb[0].mxu0
  %v1642 = vpop.f32.mrb[0].mxu0
  %v1643 = vadd.f32 %v1254, %v1642
  %v1644 = vpop.f32.mrb[0].mxu0
  %1645 = vmatprep.mubr.bf16.mxu0 0
  %1646 = vmatmul.mubr.bf16.gmra.mrb[0].mxu0 %v1363
  %v1647 = vpop.f32.mrb[0].mxu0
  %v1648 = vadd.f32 %v1254, %v1647
  %v1649 = vpop.f32.mrb[0].mxu0
  %v1650 = vpop.f32.mrb[0].mxu0
  %v1651 = vadd.f32 %v1254, %v1650
  %v1652 = vpop.f32.mrb[0].mxu0
  %1653 = vdwg.mxu0
  %v1654 = vmax.f32 %v1400, 0.0
  %v1655 = vmax.f32 %v1403, 0.0
  %v1656 = vmax.f32 %v1408, 0.0
  %v1657 = vmax.f32 %v1411, 0.0
  %v1658 = vmax.f32 %v1416, 0.0
  %v1659 = vmax.f32 %v1419, 0.0
  %v1660 = vmax.f32 %v1424, 0.0
  %v1661 = vmax.f32 %v1427, 0.0
  %v1662 = vmax.f32 %v1432, 0.0
  %v1663 = vmax.f32 %v1435, 0.0
  %v1664 = vmax.f32 %v1440, 0.0
  %v1665 = vmax.f32 %v1443, 0.0
  %v1666 = vmax.f32 %v1448, 0.0
  %v1667 = vmax.f32 %v1451, 0.0
  %v1668 = vmax.f32 %v1456, 0.0
  %v1669 = vmax.f32 %v1459, 0.0
  %v1670 = vmax.f32 %v1464, 0.0
  %v1671 = vmax.f32 %v1467, 0.0
  %v1672 = vmax.f32 %v1472, 0.0
  %v1673 = vmax.f32 %v1475, 0.0
  %v1674 = vmax.f32 %v1480, 0.0
  %v1675 = vmax.f32 %v1483, 0.0
  %v1676 = vmax.f32 %v1488, 0.0
  %v1677 = vmax.f32 %v1491, 0.0
  %v1678 = vmax.f32 %v1496, 0.0
  %v1679 = vmax.f32 %v1499, 0.0
  %v1680 = vmax.f32 %v1504, 0.0
  %v1681 = vmax.f32 %v1507, 0.0
  %v1682 = vmax.f32 %v1512, 0.0
  %v1683 = vmax.f32 %v1515, 0.0
  %v1684 = vmax.f32 %v1520, 0.0
  %v1685 = vmax.f32 %v1523, 0.0
  %v1686 = vmax.f32 %v1528, 0.0
  %v1687 = vmax.f32 %v1531, 0.0
  %v1688 = vmax.f32 %v1536, 0.0
  %v1689 = vmax.f32 %v1539, 0.0
  %v1690 = vmax.f32 %v1544, 0.0
  %v1691 = vmax.f32 %v1547, 0.0
  %v1692 = vmax.f32 %v1552, 0.0
  %v1693 = vmax.f32 %v1555, 0.0
  %v1694 = vmax.f32 %v1560, 0.0
  %v1695 = vmax.f32 %v1563, 0.0
  %v1696 = vmax.f32 %v1568, 0.0
  %v1697 = vmax.f32 %v1571, 0.0
  %v1698 = vmax.f32 %v1576, 0.0
  %v1699 = vmax.f32 %v1579, 0.0
  %v1700 = vmax.f32 %v1584, 0.0
  %v1701 = vmax.f32 %v1587, 0.0
  %v1702 = vmax.f32 %v1592, 0.0
  %v1703 = vmax.f32 %v1595, 0.0
  %v1704 = vmax.f32 %v1600, 0.0
  %v1705 = vmax.f32 %v1603, 0.0
  %v1706 = vmax.f32 %v1608, 0.0
  %v1707 = vmax.f32 %v1611, 0.0
  %v1708 = vmax.f32 %v1616, 0.0
  %v1709 = vmax.f32 %v1619, 0.0
  %v1710 = vmax.f32 %v1624, 0.0
  %v1711 = vmax.f32 %v1627, 0.0
  %v1712 = vmax.f32 %v1632, 0.0
  %v1713 = vmax.f32 %v1635, 0.0
  %v1714 = vmax.f32 %v1640, 0.0
  %v1715 = vmax.f32 %v1643, 0.0
  %v1716 = vmax.f32 %v1648, 0.0
  %v1717 = vmax.f32 %v1651, 0.0
  %v1718 = vmax.f32 %v1654, %v1655
  %v1719 = vrot.slane %v1718, 4
  %v1720 = vmax.f32 %v1718, %v1719
  %v1721 = vrot.slane %v1720, 2
  %v1722 = vmax.f32 %v1720, %v1721
  %v1723 = vrot.slane %v1722, 1
  %v1724 = vmax.f32 %v1722, %v1723
  %v1725 = vmax.f32 %v1656, %v1657
  %v1726 = vrot.slane %v1725, 4
  %v1727 = vmax.f32 %v1725, %v1726
  %v1728 = vrot.slane %v1727, 2
  %v1729 = vmax.f32 %v1727, %v1728
  %v1730 = vrot.slane %v1729, 1
  %v1731 = vmax.f32 %v1729, %v1730
  %v1732 = vmax.f32 %v1658, %v1659
  %v1733 = vrot.slane %v1732, 4
  %v1734 = vmax.f32 %v1732, %v1733
  %v1735 = vrot.slane %v1734, 2
  %v1736 = vmax.f32 %v1734, %v1735
  %v1737 = vrot.slane %v1736, 1
  %v1738 = vmax.f32 %v1736, %v1737
  %v1739 = vmax.f32 %v1660, %v1661
  %v1740 = vrot.slane %v1739, 4
  %v1741 = vmax.f32 %v1739, %v1740
  %v1742 = vrot.slane %v1741, 2
  %v1743 = vmax.f32 %v1741, %v1742
  %v1744 = vrot.slane %v1743, 1
  %v1745 = vmax.f32 %v1743, %v1744
  %v1746 = vmax.f32 %v1662, %v1663
  %v1747 = vrot.slane %v1746, 4
  %v1748 = vmax.f32 %v1746, %v1747
  %v1749 = vrot.slane %v1748, 2
  %v1750 = vmax.f32 %v1748, %v1749
  %v1751 = vrot.slane %v1750, 1
  %v1752 = vmax.f32 %v1750, %v1751
  %v1753 = vmax.f32 %v1664, %v1665
  %v1754 = vrot.slane %v1753, 4
  %v1755 = vmax.f32 %v1753, %v1754
  %v1756 = vrot.slane %v1755, 2
  %v1757 = vmax.f32 %v1755, %v1756
  %v1758 = vrot.slane %v1757, 1
  %v1759 = vmax.f32 %v1757, %v1758
  %v1760 = vmax.f32 %v1666, %v1667
  %v1761 = vrot.slane %v1760, 4
  %v1762 = vmax.f32 %v1760, %v1761
  %v1763 = vrot.slane %v1762, 2
  %v1764 = vmax.f32 %v1762, %v1763
  %v1765 = vrot.slane %v1764, 1
  %v1766 = vmax.f32 %v1764, %v1765
  %v1767 = vmax.f32 %v1668, %v1669
  %v1768 = vrot.slane %v1767, 4
  %v1769 = vmax.f32 %v1767, %v1768
  %v1770 = vrot.slane %v1769, 2
  %v1771 = vmax.f32 %v1769, %v1770
  %v1772 = vrot.slane %v1771, 1
  %v1773 = vmax.f32 %v1771, %v1772
  %v1774 = vmax.f32 %v1670, %v1671
  %v1775 = vrot.slane %v1774, 4
  %v1776 = vmax.f32 %v1774, %v1775
  %v1777 = vrot.slane %v1776, 2
  %v1778 = vmax.f32 %v1776, %v1777
  %v1779 = vrot.slane %v1778, 1
  %v1780 = vmax.f32 %v1778, %v1779
  %v1781 = vmax.f32 %v1672, %v1673
  %v1782 = vrot.slane %v1781, 4
  %v1783 = vmax.f32 %v1781, %v1782
  %v1784 = vrot.slane %v1783, 2
  %v1785 = vmax.f32 %v1783, %v1784
  %v1786 = vrot.slane %v1785, 1
  %v1787 = vmax.f32 %v1785, %v1786
  %v1788 = vmax.f32 %v1674, %v1675
  %v1789 = vrot.slane %v1788, 4
  %v1790 = vmax.f32 %v1788, %v1789
  %v1791 = vrot.slane %v1790, 2
  %v1792 = vmax.f32 %v1790, %v1791
  %v1793 = vrot.slane %v1792, 1
  %v1794 = vmax.f32 %v1792, %v1793
  %v1795 = vmax.f32 %v1676, %v1677
  %v1796 = vrot.slane %v1795, 4
  %v1797 = vmax.f32 %v1795, %v1796
  %v1798 = vrot.slane %v1797, 2
  %v1799 = vmax.f32 %v1797, %v1798
  %v1800 = vrot.slane %v1799, 1
  %v1801 = vmax.f32 %v1799, %v1800
  %v1802 = vmax.f32 %v1678, %v1679
  %v1803 = vrot.slane %v1802, 4
  %v1804 = vmax.f32 %v1802, %v1803
  %v1805 = vrot.slane %v1804, 2
  %v1806 = vmax.f32 %v1804, %v1805
  %v1807 = vrot.slane %v1806, 1
  %v1808 = vmax.f32 %v1806, %v1807
  %v1809 = vmax.f32 %v1680, %v1681
  %v1810 = vrot.slane %v1809, 4
  %v1811 = vmax.f32 %v1809, %v1810
  %v1812 = vrot.slane %v1811, 2
  %v1813 = vmax.f32 %v1811, %v1812
  %v1814 = vrot.slane %v1813, 1
  %v1815 = vmax.f32 %v1813, %v1814
  %v1816 = vmax.f32 %v1682, %v1683
  %v1817 = vrot.slane %v1816, 4
  %v1818 = vmax.f32 %v1816, %v1817
  %v1819 = vrot.slane %v1818, 2
  %v1820 = vmax.f32 %v1818, %v1819
  %v1821 = vrot.slane %v1820, 1
  %v1822 = vmax.f32 %v1820, %v1821
  %v1823 = vmax.f32 %v1684, %v1685
  %v1824 = vrot.slane %v1823, 4
  %v1825 = vmax.f32 %v1823, %v1824
  %v1826 = vrot.slane %v1825, 2
  %v1827 = vmax.f32 %v1825, %v1826
  %v1828 = vrot.slane %v1827, 1
  %v1829 = vmax.f32 %v1827, %v1828
  %v1830 = vmax.f32 %v1686, %v1687
  %v1831 = vrot.slane %v1830, 4
  %v1832 = vmax.f32 %v1830, %v1831
  %v1833 = vrot.slane %v1832, 2
  %v1834 = vmax.f32 %v1832, %v1833
  %v1835 = vrot.slane %v1834, 1
  %v1836 = vmax.f32 %v1834, %v1835
  %v1837 = vmax.f32 %v1688, %v1689
  %v1838 = vrot.slane %v1837, 4
  %v1839 = vmax.f32 %v1837, %v1838
  %v1840 = vrot.slane %v1839, 2
  %v1841 = vmax.f32 %v1839, %v1840
  %v1842 = vrot.slane %v1841, 1
  %v1843 = vmax.f32 %v1841, %v1842
  %v1844 = vmax.f32 %v1690, %v1691
  %v1845 = vrot.slane %v1844, 4
  %v1846 = vmax.f32 %v1844, %v1845
  %v1847 = vrot.slane %v1846, 2
  %v1848 = vmax.f32 %v1846, %v1847
  %v1849 = vrot.slane %v1848, 1
  %v1850 = vmax.f32 %v1848, %v1849
  %v1851 = vmax.f32 %v1692, %v1693
  %v1852 = vrot.slane %v1851, 4
  %v1853 = vmax.f32 %v1851, %v1852
  %v1854 = vrot.slane %v1853, 2
  %v1855 = vmax.f32 %v1853, %v1854
  %v1856 = vrot.slane %v1855, 1
  %v1857 = vmax.f32 %v1855, %v1856
  %v1858 = vmax.f32 %v1694, %v1695
  %v1859 = vrot.slane %v1858, 4
  %v1860 = vmax.f32 %v1858, %v1859
  %v1861 = vrot.slane %v1860, 2
  %v1862 = vmax.f32 %v1860, %v1861
  %v1863 = vrot.slane %v1862, 1
  %v1864 = vmax.f32 %v1862, %v1863
  %v1865 = vmax.f32 %v1696, %v1697
  %v1866 = vrot.slane %v1865, 4
  %v1867 = vmax.f32 %v1865, %v1866
  %v1868 = vrot.slane %v1867, 2
  %v1869 = vmax.f32 %v1867, %v1868
  %v1870 = vrot.slane %v1869, 1
  %v1871 = vmax.f32 %v1869, %v1870
  %v1872 = vmax.f32 %v1698, %v1699
  %v1873 = vrot.slane %v1872, 4
  %v1874 = vmax.f32 %v1872, %v1873
  %v1875 = vrot.slane %v1874, 2
  %v1876 = vmax.f32 %v1874, %v1875
  %v1877 = vrot.slane %v1876, 1
  %v1878 = vmax.f32 %v1876, %v1877
  %v1879 = vmax.f32 %v1700, %v1701
  %v1880 = vrot.slane %v1879, 4
  %v1881 = vmax.f32 %v1879, %v1880
  %v1882 = vrot.slane %v1881, 2
  %v1883 = vmax.f32 %v1881, %v1882
  %v1884 = vrot.slane %v1883, 1
  %v1885 = vmax.f32 %v1883, %v1884
  %v1886 = vmax.f32 %v1702, %v1703
  %v1887 = vrot.slane %v1886, 4
  %v1888 = vmax.f32 %v1886, %v1887
  %v1889 = vrot.slane %v1888, 2
  %v1890 = vmax.f32 %v1888, %v1889
  %v1891 = vrot.slane %v1890, 1
  %v1892 = vmax.f32 %v1890, %v1891
  %v1893 = vmax.f32 %v1704, %v1705
  %v1894 = vrot.slane %v1893, 4
  %v1895 = vmax.f32 %v1893, %v1894
  %v1896 = vrot.slane %v1895, 2
  %v1897 = vmax.f32 %v1895, %v1896
  %v1898 = vrot.slane %v1897, 1
  %v1899 = vmax.f32 %v1897, %v1898
  %v1900 = vmax.f32 %v1706, %v1707
  %v1901 = vrot.slane %v1900, 4
  %v1902 = vmax.f32 %v1900, %v1901
  %v1903 = vrot.slane %v1902, 2
  %v1904 = vmax.f32 %v1902, %v1903
  %v1905 = vrot.slane %v1904, 1
  %v1906 = vmax.f32 %v1904, %v1905
  %v1907 = vmax.f32 %v1708, %v1709
  %v1908 = vrot.slane %v1907, 4
  %v1909 = vmax.f32 %v1907, %v1908
  %v1910 = vrot.slane %v1909, 2
  %v1911 = vmax.f32 %v1909, %v1910
  %v1912 = vrot.slane %v1911, 1
  %v1913 = vmax.f32 %v1911, %v1912
  %v1914 = vmax.f32 %v1710, %v1711
  %v1915 = vrot.slane %v1914, 4
  %v1916 = vmax.f32 %v1914, %v1915
  %v1917 = vrot.slane %v1916, 2
  %v1918 = vmax.f32 %v1916, %v1917
  %v1919 = vrot.slane %v1918, 1
  %v1920 = vmax.f32 %v1918, %v1919
  %v1921 = vmax.f32 %v1712, %v1713
  %v1922 = vrot.slane %v1921, 4
  %v1923 = vmax.f32 %v1921, %v1922
  %v1924 = vrot.slane %v1923, 2
  %v1925 = vmax.f32 %v1923, %v1924
  %v1926 = vrot.slane %v1925, 1
  %v1927 = vmax.f32 %v1925, %v1926
  %v1928 = vmax.f32 %v1714, %v1715
  %v1929 = vrot.slane %v1928, 4
  %v1930 = vmax.f32 %v1928, %v1929
  %v1931 = vrot.slane %v1930, 2
  %v1932 = vmax.f32 %v1930, %v1931
  %v1933 = vrot.slane %v1932, 1
  %v1934 = vmax.f32 %v1932, %v1933
  %v1935 = vmax.f32 %v1716, %v1717
  %v1936 = vrot.slane %v1935, 4
  %v1937 = vmax.f32 %v1935, %v1936
  %v1938 = vrot.slane %v1937, 2
  %v1939 = vmax.f32 %v1937, %v1938
  %v1940 = vrot.slane %v1939, 1
  %v1941 = vmax.f32 %v1939, %v1940
  %vm1974 = vcmask 1041409
  %v1975 = vsel %vm1974, %v1731, %v1724
  %vm1976 = vcmask 1042434
  %v1977 = vsel %vm1976, %v1738, %v1975
  %vm1978 = vcmask 1043459
  %v1979 = vsel %vm1978, %v1745, %v1977
  %vm1980 = vcmask 1044484
  %v1981 = vsel %vm1980, %v1752, %v1979
  %vm1982 = vcmask 1045509
  %v1983 = vsel %vm1982, %v1759, %v1981
  %vm1984 = vcmask 1046534
  %v1985 = vsel %vm1984, %v1766, %v1983
  %vm1986 = vcmask 1047559
  %v1987 = vsel %vm1986, %v1773, %v1985
  %v1988 = vsel %vm1974, %v1787, %v1780
  %v1989 = vsel %vm1976, %v1794, %v1988
  %v1990 = vsel %vm1978, %v1801, %v1989
  %v1991 = vsel %vm1980, %v1808, %v1990
  %v1992 = vsel %vm1982, %v1815, %v1991
  %v1993 = vsel %vm1984, %v1822, %v1992
  %v1994 = vsel %vm1986, %v1829, %v1993
  %v1995 = vsel %vm1974, %v1843, %v1836
  %v1996 = vsel %vm1976, %v1850, %v1995
  %v1997 = vsel %vm1978, %v1857, %v1996
  %v1998 = vsel %vm1980, %v1864, %v1997
  %v1999 = vsel %vm1982, %v1871, %v1998
  %v2000 = vsel %vm1984, %v1878, %v1999
  %v2001 = vsel %vm1986, %v1885, %v2000
  %v2002 = vsel %vm1974, %v1899, %v1892
  %v2003 = vsel %vm1976, %v1906, %v2002
  %v2004 = vsel %vm1978, %v1913, %v2003
  %v2005 = vsel %vm1980, %v1920, %v2004
  %v2006 = vsel %vm1982, %v1927, %v2005
  %v2007 = vsel %vm1984, %v1934, %v2006
  %v2008 = vsel %vm1986, %v1941, %v2007
  %2013 = vst [vmem:[%s7] sm:$0xff] %v1987
  %2014 = vst [vmem:[%s7 + $0x8] sm:$0xff] %v1994
  %2015 = vst [vmem:[%s7 + $0x10] sm:$0xff] %v2001
  %2016 = vst [vmem:[%s7 + $0x18] sm:$0xff] %v2008
  // Predicated region
  $region30: #{pointnet_sa_msg_forward.3} parent=0 // pred_check
    _
  $region31: #{pointnet_sa_msg_forward.3} parent=0 // pred_check_branch
    %2018 = sbr.rel (0) target = $region33
  $region32: #{pointnet_sa_msg_forward.3} parent=0 // pred_region
    _
  $region33: #{pointnet_sa_msg_forward.3} parent=0 // pred_fallthru
    _
  // Predicated region
  $region34: #{pointnet_sa_msg_forward.3} parent=0 // pred_check
    _
  $region35: #{pointnet_sa_msg_forward.3} parent=0 // pred_check_branch
    %2020 = sbr.rel (0) target = $region37
  $region36: #{pointnet_sa_msg_forward.3} parent=0 // pred_region
    _
  $region37: #{pointnet_sa_msg_forward.3} parent=0 // pred_fallthru
    _

// kernel: pointnet_sa_msg_forward.2
$region0: #{pointnet_sa_msg_forward.2}
  #allocation0 [shape = 'u32[]', space=smem, size = 0x4, offset = 0x4, fixed_abs, tag = 'smem constant byte address 0x4 - core index']
  #allocation1 [shape = 'u32[144,128]{1,0:T(1,128)}', space=vmem, size = 0x12000, scoped, tag = 'internal scratch']
  %s0 = inlined_call_operand.vmem [shape: bf16[256,7], index: 0, kind: input, shape index: {}]
  %s1 = inlined_call_operand.vmem [shape: bf16[7,16], index: 1, kind: input, shape index: {}]
  %s2 = inlined_call_operand.vmem [shape: bf16[16,128], index: 2, kind: input, shape index: {}]
  %s3 = inlined_call_operand.vmem [shape: f32[1,16], index: 3, kind: input, shape index: {}]
  %s4 = inlined_call_operand.vmem [shape: f32[1,128], index: 4, kind: input, shape index: {}]
  %s5 = inlined_call_operand.vmem [shape: f32[32,128], index: 5, kind: output, shape index: {}]
  %s6 = sld [smem:[#allocation0]]
  $region30: #{pointnet_sa_msg_forward.2} parent=0
    _
  %s8 = ssub.s32 1, %s6
  %s9 = scalar_select 0, %s8, %s6
  // Predicated region
  $region2: #{pointnet_sa_msg_forward.2} parent=0 // pred_check
    _
  $region3: #{pointnet_sa_msg_forward.2} parent=0 // pred_check_branch
    %11 = sbr.rel (0) target = $region5
  $region4: #{pointnet_sa_msg_forward.2} parent=0 // pred_region
    _
  $region5: #{pointnet_sa_msg_forward.2} parent=0 // pred_fallthru
    _
  // Predicated region
  $region6: #{pointnet_sa_msg_forward.2} parent=0 // pred_check
    _
  $region7: #{pointnet_sa_msg_forward.2} parent=0 // pred_check_branch
    %13 = sbr.rel (0) target = $region9
  $region8: #{pointnet_sa_msg_forward.2} parent=0 // pred_region
    _
  $region9: #{pointnet_sa_msg_forward.2} parent=0 // pred_fallthru
    _
  // Predicated region
  $region10: #{pointnet_sa_msg_forward.2} parent=0 // pred_check
    _
  $region11: #{pointnet_sa_msg_forward.2} parent=0 // pred_check_branch
    %15 = sbr.rel (0) target = $region13
  $region12: #{pointnet_sa_msg_forward.2} parent=0 // pred_region
    _
  $region13: #{pointnet_sa_msg_forward.2} parent=0 // pred_fallthru
    _
  // Predicated region
  $region14: #{pointnet_sa_msg_forward.2} parent=0 // pred_check
    _
  $region15: #{pointnet_sa_msg_forward.2} parent=0 // pred_check_branch
    %17 = sbr.rel (0) target = $region17
  $region16: #{pointnet_sa_msg_forward.2} parent=0 // pred_region
    _
  $region17: #{pointnet_sa_msg_forward.2} parent=0 // pred_fallthru
    _
  // Predicated region
  $region18: #{pointnet_sa_msg_forward.2} parent=0 // pred_check
    _
  $region19: #{pointnet_sa_msg_forward.2} parent=0 // pred_check_branch
    %19 = sbr.rel (0) target = $region21
  $region20: #{pointnet_sa_msg_forward.2} parent=0 // pred_region
    _
  $region21: #{pointnet_sa_msg_forward.2} parent=0 // pred_fallthru
    _
  %v21 = vld [vmem:[%s0] sm:$0xf]
  %v22 = vld [vmem:[%s0 + $0x4] sm:$0xf]
  %v23 = vld [vmem:[%s0 + $0x8] sm:$0xf]
  %v24 = vld [vmem:[%s0 + $0xc] sm:$0xf]
  %v25 = vld [vmem:[%s0 + $0x10] sm:$0xf]
  %v26 = vld [vmem:[%s0 + $0x14] sm:$0xf]
  %v27 = vld [vmem:[%s0 + $0x18] sm:$0xf]
  %v28 = vld [vmem:[%s0 + $0x1c] sm:$0xf]
  %v29 = vld [vmem:[%s0 + $0x20] sm:$0xf]
  %v30 = vld [vmem:[%s0 + $0x24] sm:$0xf]
  %v31 = vld [vmem:[%s0 + $0x28] sm:$0xf]
  %v32 = vld [vmem:[%s0 + $0x2c] sm:$0xf]
  %v33 = vld [vmem:[%s0 + $0x30] sm:$0xf]
  %v34 = vld [vmem:[%s0 + $0x34] sm:$0xf]
  %v35 = vld [vmem:[%s0 + $0x38] sm:$0xf]
  %v36 = vld [vmem:[%s0 + $0x3c] sm:$0xf]
  %v37 = vld [vmem:[%s0 + $0x40] sm:$0xf]
  %v38 = vld [vmem:[%s0 + $0x44] sm:$0xf]
  %v39 = vld [vmem:[%s0 + $0x48] sm:$0xf]
  %v40 = vld [vmem:[%s0 + $0x4c] sm:$0xf]
  %v41 = vld [vmem:[%s0 + $0x50] sm:$0xf]
  %v42 = vld [vmem:[%s0 + $0x54] sm:$0xf]
  %v43 = vld [vmem:[%s0 + $0x58] sm:$0xf]
  %v44 = vld [vmem:[%s0 + $0x5c] sm:$0xf]
  %v45 = vld [vmem:[%s0 + $0x60] sm:$0xf]
  %v46 = vld [vmem:[%s0 + $0x64] sm:$0xf]
  %v47 = vld [vmem:[%s0 + $0x68] sm:$0xf]
  %v48 = vld [vmem:[%s0 + $0x6c] sm:$0xf]
  %v49 = vld [vmem:[%s0 + $0x70] sm:$0xf]
  %v50 = vld [vmem:[%s0 + $0x74] sm:$0xf]
  %v51 = vld [vmem:[%s0 + $0x78] sm:$0xf]
  %v52 = vld [vmem:[%s0 + $0x7c] sm:$0xf]
  %v53 = vld [vmem:[%s1] sm:$0xf]
  %v54 = vld [vmem:[%s3] sm:$0x1]
  %v56 = vlaneseq
  %v57 = vshrl.u32 %v56, 7
  %v58 = vsub.s32 0, %v57
  %v59 = vrot.slane %v54, %v58
  %v93 = vunpack.c.l.b16 %v21
  %v94 = vunpack.c.l.b16 %v22
  %v95 = vunpack.c.l.b16 %v23
  %v96 = vunpack.c.l.b16 %v24
  %v97 = vunpack.c.l.b16 %v25
  %v98 = vunpack.c.l.b16 %v26
  %v99 = vunpack.c.l.b16 %v27
  %v100 = vunpack.c.l.b16 %v28
  %v101 = vunpack.c.l.b16 %v29
  %v102 = vunpack.c.l.b16 %v30
  %v103 = vunpack.c.l.b16 %v31
  %v104 = vunpack.c.l.b16 %v32
  %v105 = vunpack.c.l.b16 %v33
  %v106 = vunpack.c.l.b16 %v34
  %v107 = vunpack.c.l.b16 %v35
  %v108 = vunpack.c.l.b16 %v36
  %v109 = vunpack.c.l.b16 %v37
  %v110 = vunpack.c.l.b16 %v38
  %v111 = vunpack.c.l.b16 %v39
  %v112 = vunpack.c.l.b16 %v40
  %v113 = vunpack.c.l.b16 %v41
  %v114 = vunpack.c.l.b16 %v42
  %v115 = vunpack.c.l.b16 %v43
  %v116 = vunpack.c.l.b16 %v44
  %v117 = vunpack.c.l.b16 %v45
  %v118 = vunpack.c.l.b16 %v46
  %v119 = vunpack.c.l.b16 %v47
  %v120 = vunpack.c.l.b16 %v48
  %v121 = vunpack.c.l.b16 %v49
  %v122 = vunpack.c.l.b16 %v50
  %v123 = vunpack.c.l.b16 %v51
  %v124 = vunpack.c.l.b16 %v52
  %v125 = vpack.c.b16 %v94, %v93
  %v126 = vpack.c.b16 %v96, %v95
  %v127 = vpack.c.b16 %v98, %v97
  %v128 = vpack.c.b16 %v100, %v99
  %v129 = vpack.c.b16 %v102, %v101
  %v130 = vpack.c.b16 %v104, %v103
  %v131 = vpack.c.b16 %v106, %v105
  %v132 = vpack.c.b16 %v108, %v107
  %v133 = vpack.c.b16 %v110, %v109
  %v134 = vpack.c.b16 %v112, %v111
  %v135 = vpack.c.b16 %v114, %v113
  %v136 = vpack.c.b16 %v116, %v115
  %v137 = vpack.c.b16 %v118, %v117
  %v138 = vpack.c.b16 %v120, %v119
  %v139 = vpack.c.b16 %v122, %v121
  %v140 = vpack.c.b16 %v124, %v123
  %vm141 = vcmask 56320
  %v143 = vsel %vm141, %v125, 0
  %v146 = vsel %vm141, %v126, 0
  %v149 = vsel %vm141, %v127, 0
  %v152 = vsel %vm141, %v128, 0
  %v155 = vsel %vm141, %v129, 0
  %v158 = vsel %vm141, %v130, 0
  %v161 = vsel %vm141, %v131, 0
  %v164 = vsel %vm141, %v132, 0
  %v167 = vsel %vm141, %v133, 0
  %v170 = vsel %vm141, %v134, 0
  %v173 = vsel %vm141, %v135, 0
  %v176 = vsel %vm141, %v136, 0
  %v179 = vsel %vm141, %v137, 0
  %v182 = vsel %vm141, %v138, 0
  %v185 = vsel %vm141, %v139, 0
  %v188 = vsel %vm141, %v140, 0
  %vm190 = vcmask 1042432
  %vm191 = vcmask 1043456
  %v192 = vsel %vm190, 4294967295, 65535
  %v193 = vsel %vm191, %v192, 0
  %v195 = vand.u32 %v53, %v193
  %197 = vmatprep.subr.bf16.mxu0 0
  %198 = vmatpush1.bf16.msra.mxu0 %v195
  %199 = vmatprep.subr.bf16.mxu0 0
  %200 = vmatpush1.bf16.msra.mxu0 0
  %201 = vmatprep.subr.bf16.mxu0 0
  %202 = vmatpush1.bf16.msra.mxu0 0
  %203 = vmatprep.subr.bf16.mxu0 0
  %204 = vmatpush1.bf16.msra.mxu0 0
  %205 = vmatprep.subr.bf16.mxu0 0
  %206 = vmatpush1.bf16.msra.mxu0 0
  %207 = vmatprep.subr.bf16.mxu0 0
  %208 = vmatpush1.bf16.msra.mxu0 0
  %209 = vmatprep.subr.bf16.mxu0 0
  %210 = vmatpush1.bf16.msra.mxu0 0
  %211 = vmatprep.subr.bf16.mxu0 0
  %212 = vmatpush1.bf16.msra.mxu0 0
  %213 = vmatprep.subr.bf16.mxu0 0
  %214 = vmatpush1.bf16.msra.mxu0 0
  %215 = vmatprep.subr.bf16.mxu0 0
  %216 = vmatpush1.bf16.msra.mxu0 0
  %217 = vmatprep.subr.bf16.mxu0 0
  %218 = vmatpush1.bf16.msra.mxu0 0
  %219 = vmatprep.subr.bf16.mxu0 0
  %220 = vmatpush1.bf16.msra.mxu0 0
  %221 = vmatprep.subr.bf16.mxu0 0
  %222 = vmatpush1.bf16.msra.mxu0 0
  %223 = vmatprep.subr.bf16.mxu0 0
  %224 = vmatpush1.bf16.msra.mxu0 0
  %225 = vmatprep.subr.bf16.mxu0 0
  %226 = vmatpush1.bf16.msra.mxu0 0
  %227 = vmatprep.subr.bf16.mxu0 0
  %228 = vmatpush1.bf16.msra.mxu0 0
  %229 = vmatprep.mubr.bf16.mxu0 0
  %230 = vmatmul.mubr.bf16.gmra.mrb[0].mxu0 %v143
  %v231 = vpop.f32.mrb[0].mxu0
  %v232 = vadd.f32 %v59, %v231
  %v233 = vpop.f32.mrb[0].mxu0
  %v234 = vpop.f32.mrb[0].mxu0
  %v235 = vadd.f32 %v59, %v234
  %v236 = vpop.f32.mrb[0].mxu0
  %237 = vmatprep.mubr.bf16.mxu0 0
  %238 = vmatmul.mubr.bf16.gmra.mrb[0].mxu0 %v146
  %v239 = vpop.f32.mrb[0].mxu0
  %v240 = vadd.f32 %v59, %v239
  %v241 = vpop.f32.mrb[0].mxu0
  %v242 = vpop.f32.mrb[0].mxu0
  %v243 = vadd.f32 %v59, %v242
  %v244 = vpop.f32.mrb[0].mxu0
  %245 = vmatprep.mubr.bf16.mxu0 0
  %246 = vmatmul.mubr.bf16.gmra.mrb[0].mxu0 %v149
  %v247 = vpop.f32.mrb[0].mxu0
  %v248 = vadd.f32 %v59, %v247
  %v249 = vpop.f32.mrb[0].mxu0
  %v250 = vpop.f32.mrb[0].mxu0
  %v251 = vadd.f32 %v59, %v250
  %v252 = vpop.f32.mrb[0].mxu0
  %253 = vmatprep.mubr.bf16.mxu0 0
  %254 = vmatmul.mubr.bf16.gmra.mrb[0].mxu0 %v152
  %v255 = vpop.f32.mrb[0].mxu0
  %v256 = vadd.f32 %v59, %v255
  %v257 = vpop.f32.mrb[0].mxu0
  %v258 = vpop.f32.mrb[0].mxu0
  %v259 = vadd.f32 %v59, %v258
  %v260 = vpop.f32.mrb[0].mxu0
  %261 = vmatprep.mubr.bf16.mxu0 0
  %262 = vmatmul.mubr.bf16.gmra.mrb[0].mxu0 %v155
  %v263 = vpop.f32.mrb[0].mxu0
  %v264 = vadd.f32 %v59, %v263
  %v265 = vpop.f32.mrb[0].mxu0
  %v266 = vpop.f32.mrb[0].mxu0
  %v267 = vadd.f32 %v59, %v266
  %v268 = vpop.f32.mrb[0].mxu0
  %269 = vmatprep.mubr.bf16.mxu0 0
  %270 = vmatmul.mubr.bf16.gmra.mrb[0].mxu0 %v158
  %v271 = vpop.f32.mrb[0].mxu0
  %v272 = vadd.f32 %v59, %v271
  %v273 = vpop.f32.mrb[0].mxu0
  %v274 = vpop.f32.mrb[0].mxu0
  %v275 = vadd.f32 %v59, %v274
  %v276 = vpop.f32.mrb[0].mxu0
  %277 = vmatprep.mubr.bf16.mxu0 0
  %278 = vmatmul.mubr.bf16.gmra.mrb[0].mxu0 %v161
  %v279 = vpop.f32.mrb[0].mxu0
  %v280 = vadd.f32 %v59, %v279
  %v281 = vpop.f32.mrb[0].mxu0
  %v282 = vpop.f32.mrb[0].mxu0
  %v283 = vadd.f32 %v59, %v282
  %v284 = vpop.f32.mrb[0].mxu0
  %285 = vmatprep.mubr.bf16.mxu0 0
  %286 = vmatmul.mubr.bf16.gmra.mrb[0].mxu0 %v164
  %v287 = vpop.f32.mrb[0].mxu0
  %v288 = vadd.f32 %v59, %v287
  %v289 = vpop.f32.mrb[0].mxu0
  %v290 = vpop.f32.mrb[0].mxu0
  %v291 = vadd.f32 %v59, %v290
  %v292 = vpop.f32.mrb[0].mxu0
  %293 = vmatprep.mubr.bf16.mxu0 0
  %294 = vmatmul.mubr.bf16.gmra.mrb[0].mxu0 %v167
  %v295 = vpop.f32.mrb[0].mxu0
  %v296 = vadd.f32 %v59, %v295
  %v297 = vpop.f32.mrb[0].mxu0
  %v298 = vpop.f32.mrb[0].mxu0
  %v299 = vadd.f32 %v59, %v298
  %v300 = vpop.f32.mrb[0].mxu0
  %301 = vmatprep.mubr.bf16.mxu0 0
  %302 = vmatmul.mubr.bf16.gmra.mrb[0].mxu0 %v170
  %v303 = vpop.f32.mrb[0].mxu0
  %v304 = vadd.f32 %v59, %v303
  %v305 = vpop.f32.mrb[0].mxu0
  %v306 = vpop.f32.mrb[0].mxu0
  %v307 = vadd.f32 %v59, %v306
  %v308 = vpop.f32.mrb[0].mxu0
  %309 = vmatprep.mubr.bf16.mxu0 0
  %310 = vmatmul.mubr.bf16.gmra.mrb[0].mxu0 %v173
  %v311 = vpop.f32.mrb[0].mxu0
  %v312 = vadd.f32 %v59, %v311
  %v313 = vpop.f32.mrb[0].mxu0
  %v314 = vpop.f32.mrb[0].mxu0
  %v315 = vadd.f32 %v59, %v314
  %v316 = vpop.f32.mrb[0].mxu0
  %317 = vmatprep.mubr.bf16.mxu0 0
  %318 = vmatmul.mubr.bf16.gmra.mrb[0].mxu0 %v176
  %v319 = vpop.f32.mrb[0].mxu0
  %v320 = vadd.f32 %v59, %v319
  %v321 = vpop.f32.mrb[0].mxu0
  %v322 = vpop.f32.mrb[0].mxu0
  %v323 = vadd.f32 %v59, %v322
  %v324 = vpop.f32.mrb[0].mxu0
  %325 = vmatprep.mubr.bf16.mxu0 0
  %326 = vmatmul.mubr.bf16.gmra.mrb[0].mxu0 %v179
  %v327 = vpop.f32.mrb[0].mxu0
  %v328 = vadd.f32 %v59, %v327
  %v329 = vpop.f32.mrb[0].mxu0
  %v330 = vpop.f32.mrb[0].mxu0
  %v331 = vadd.f32 %v59, %v330
  %v332 = vpop.f32.mrb[0].mxu0
  %333 = vmatprep.mubr.bf16.mxu0 0
  %334 = vmatmul.mubr.bf16.gmra.mrb[0].mxu0 %v182
  %v335 = vpop.f32.mrb[0].mxu0
  %v336 = vadd.f32 %v59, %v335
  %v337 = vpop.f32.mrb[0].mxu0
  %v338 = vpop.f32.mrb[0].mxu0
  %v339 = vadd.f32 %v59, %v338
  %v340 = vpop.f32.mrb[0].mxu0
  %341 = vmatprep.mubr.bf16.mxu0 0
  %342 = vmatmul.mubr.bf16.gmra.mrb[0].mxu0 %v185
  %v343 = vpop.f32.mrb[0].mxu0
  %v344 = vadd.f32 %v59, %v343
  %v345 = vpop.f32.mrb[0].mxu0
  %v346 = vpop.f32.mrb[0].mxu0
  %v347 = vadd.f32 %v59, %v346
  %v348 = vpop.f32.mrb[0].mxu0
  %349 = vmatprep.mubr.bf16.mxu0 0
  %350 = vmatmul.mubr.bf16.gmra.mrb[0].mxu0 %v188
  %v351 = vpop.f32.mrb[0].mxu0
  %v352 = vadd.f32 %v59, %v351
  %v353 = vpop.f32.mrb[0].mxu0
  %v354 = vpop.f32.mrb[0].mxu0
  %v355 = vadd.f32 %v59, %v354
  %v356 = vpop.f32.mrb[0].mxu0
  %357 = vdwg.mxu0
  %v358 = vmax.f32 %v232, 0.0
  %v359 = vmax.f32 %v235, 0.0
  %v360 = vmax.f32 %v240, 0.0
  %v361 = vmax.f32 %v243, 0.0
  %v362 = vmax.f32 %v248, 0.0
  %v363 = vmax.f32 %v251, 0.0
  %v364 = vmax.f32 %v256, 0.0
  %v365 = vmax.f32 %v259, 0.0
  %v366 = vmax.f32 %v264, 0.0
  %v367 = vmax.f32 %v267, 0.0
  %v368 = vmax.f32 %v272, 0.0
  %v369 = vmax.f32 %v275, 0.0
  %v370 = vmax.f32 %v280, 0.0
  %v371 = vmax.f32 %v283, 0.0
  %v372 = vmax.f32 %v288, 0.0
  %v373 = vmax.f32 %v291, 0.0
  %v374 = vmax.f32 %v296, 0.0
  %v375 = vmax.f32 %v299, 0.0
  %v376 = vmax.f32 %v304, 0.0
  %v377 = vmax.f32 %v307, 0.0
  %v378 = vmax.f32 %v312, 0.0
  %v379 = vmax.f32 %v315, 0.0
  %v380 = vmax.f32 %v320, 0.0
  %v381 = vmax.f32 %v323, 0.0
  %v382 = vmax.f32 %v328, 0.0
  %v383 = vmax.f32 %v331, 0.0
  %v384 = vmax.f32 %v336, 0.0
  %v385 = vmax.f32 %v339, 0.0
  %v386 = vmax.f32 %v344, 0.0
  %v387 = vmax.f32 %v347, 0.0
  %v388 = vmax.f32 %v352, 0.0
  %v389 = vmax.f32 %v355, 0.0
  %v390 = vpack.c.bf16 %v359, %v358
  %v391 = vpack.c.bf16 %v361, %v360
  %v392 = vpack.c.bf16 %v363, %v362
  %v393 = vpack.c.bf16 %v365, %v364
  %v394 = vpack.c.bf16 %v367, %v366
  %v395 = vpack.c.bf16 %v369, %v368
  %v396 = vpack.c.bf16 %v371, %v370
  %v397 = vpack.c.bf16 %v373, %v372
  %v398 = vpack.c.bf16 %v375, %v374
  %v399 = vpack.c.bf16 %v377, %v376
  %v400 = vpack.c.bf16 %v379, %v378
  %v401 = vpack.c.bf16 %v381, %v380
  %v402 = vpack.c.bf16 %v383, %v382
  %v403 = vpack.c.bf16 %v385, %v384
  %v404 = vpack.c.bf16 %v387, %v386
  %v405 = vpack.c.bf16 %v389, %v388
  %v406 = vld [vmem:[%s2] sm:$0xf]
  %v407 = vld [vmem:[%s2 + $0x4] sm:$0xf]
  %v408 = vld [vmem:[%s4] sm:$0x1]
  %v410 = vlaneseq
  %v411 = vshrl.u32 %v410, 7
  %v412 = vsub.s32 0, %v411
  %v413 = vrot.slane %v408, %v412
  %v417 = vunpack.c.l.b16 %v406
  %v418 = vunpack.c.l.b16 %v407
  %v419 = vpack.c.b16 %v418, %v417
  %vm421 = vcmask 130048
  %v423 = vsel %vm421, %v390, 0
  %v426 = vsel %vm421, %v391, 0
  %v429 = vsel %vm421, %v392, 0
  %v432 = vsel %vm421, %v393, 0
  %v435 = vsel %vm421, %v394, 0
  %v438 = vsel %vm421, %v395, 0
  %v441 = vsel %vm421, %v396, 0
  %v444 = vsel %vm421, %v397, 0
  %v447 = vsel %vm421, %v398, 0
  %v450 = vsel %vm421, %v399, 0
  %v453 = vsel %vm421, %v400, 0
  %v456 = vsel %vm421, %v401, 0
  %v459 = vsel %vm421, %v402, 0
  %v462 = vsel %vm421, %v403, 0
  %v465 = vsel %vm421, %v404, 0
  %v468 = vsel %vm421, %v405, 0
  %470 = vmatprep.subr.bf16.mxu0 0
  %471 = vmatpush1.bf16.msra.mxu0 %v419
  %472 = vmatprep.subr.bf16.mxu0 0
  %473 = vmatpush1.bf16.msra.mxu0 0
  %474 = vmatprep.subr.bf16.mxu0 0
  %475 = vmatpush1.bf16.msra.mxu0 0
  %476 = vmatprep.subr.bf16.mxu0 0
  %477 = vmatpush1.bf16.msra.mxu0 0
  %478 = vmatprep.subr.bf16.mxu0 0
  %479 = vmatpush1.bf16.msra.mxu0 0
  %480 = vmatprep.subr.bf16.mxu0 0
  %481 = vmatpush1.bf16.msra.mxu0 0
  %482 = vmatprep.subr.bf16.mxu0 0
  %483 = vmatpush1.bf16.msra.mxu0 0
  %484 = vmatprep.subr.bf16.mxu0 0
  %485 = vmatpush1.bf16.msra.mxu0 0
  %486 = vmatprep.subr.bf16.mxu0 0
  %487 = vmatpush1.bf16.msra.mxu0 0
  %488 = vmatprep.subr.bf16.mxu0 0
  %489 = vmatpush1.bf16.msra.mxu0 0
  %490 = vmatprep.subr.bf16.mxu0 0
  %491 = vmatpush1.bf16.msra.mxu0 0
  %492 = vmatprep.subr.bf16.mxu0 0
  %493 = vmatpush1.bf16.msra.mxu0 0
  %494 = vmatprep.subr.bf16.mxu0 0
  %495 = vmatpush1.bf16.msra.mxu0 0
  %496 = vmatprep.subr.bf16.mxu0 0
  %497 = vmatpush1.bf16.msra.mxu0 0
  %498 = vmatprep.subr.bf16.mxu0 0
  %499 = vmatpush1.bf16.msra.mxu0 0
  %500 = vmatprep.subr.bf16.mxu0 0
  %501 = vmatpush1.bf16.msra.mxu0 0
  %502 = vmatprep.mubr.bf16.mxu0 0
  %503 = vmatmul.mubr.bf16.gmra.mrb[0].mxu0 %v423
  %v504 = vpop.f32.mrb[0].mxu0
  %v505 = vadd.f32 %v413, %v504
  %v506 = vpop.f32.mrb[0].mxu0
  %v507 = vpop.f32.mrb[0].mxu0
  %v508 = vadd.f32 %v413, %v507
  %v509 = vpop.f32.mrb[0].mxu0
  %510 = vmatprep.mubr.bf16.mxu0 0
  %511 = vmatmul.mubr.bf16.gmra.mrb[0].mxu0 %v426
  %v512 = vpop.f32.mrb[0].mxu0
  %v513 = vadd.f32 %v413, %v512
  %v514 = vpop.f32.mrb[0].mxu0
  %v515 = vpop.f32.mrb[0].mxu0
  %v516 = vadd.f32 %v413, %v515
  %v517 = vpop.f32.mrb[0].mxu0
  %518 = vmatprep.mubr.bf16.mxu0 0
  %519 = vmatmul.mubr.bf16.gmra.mrb[0].mxu0 %v429
  %v520 = vpop.f32.mrb[0].mxu0
  %v521 = vadd.f32 %v413, %v520
  %v522 = vpop.f32.mrb[0].mxu0
  %v523 = vpop.f32.mrb[0].mxu0
  %v524 = vadd.f32 %v413, %v523
  %v525 = vpop.f32.mrb[0].mxu0
  %526 = vmatprep.mubr.bf16.mxu0 0
  %527 = vmatmul.mubr.bf16.gmra.mrb[0].mxu0 %v432
  %v528 = vpop.f32.mrb[0].mxu0
  %v529 = vadd.f32 %v413, %v528
  %v530 = vpop.f32.mrb[0].mxu0
  %v531 = vpop.f32.mrb[0].mxu0
  %v532 = vadd.f32 %v413, %v531
  %v533 = vpop.f32.mrb[0].mxu0
  %534 = vmatprep.mubr.bf16.mxu0 0
  %535 = vmatmul.mubr.bf16.gmra.mrb[0].mxu0 %v435
  %v536 = vpop.f32.mrb[0].mxu0
  %v537 = vadd.f32 %v413, %v536
  %v538 = vpop.f32.mrb[0].mxu0
  %v539 = vpop.f32.mrb[0].mxu0
  %v540 = vadd.f32 %v413, %v539
  %v541 = vpop.f32.mrb[0].mxu0
  %542 = vmatprep.mubr.bf16.mxu0 0
  %543 = vmatmul.mubr.bf16.gmra.mrb[0].mxu0 %v438
  %v544 = vpop.f32.mrb[0].mxu0
  %v545 = vadd.f32 %v413, %v544
  %v546 = vpop.f32.mrb[0].mxu0
  %v547 = vpop.f32.mrb[0].mxu0
  %v548 = vadd.f32 %v413, %v547
  %v549 = vpop.f32.mrb[0].mxu0
  %550 = vmatprep.mubr.bf16.mxu0 0
  %551 = vmatmul.mubr.bf16.gmra.mrb[0].mxu0 %v441
  %v552 = vpop.f32.mrb[0].mxu0
  %v553 = vadd.f32 %v413, %v552
  %v554 = vpop.f32.mrb[0].mxu0
  %v555 = vpop.f32.mrb[0].mxu0
  %v556 = vadd.f32 %v413, %v555
  %v557 = vpop.f32.mrb[0].mxu0
  %558 = vmatprep.mubr.bf16.mxu0 0
  %559 = vmatmul.mubr.bf16.gmra.mrb[0].mxu0 %v444
  %v560 = vpop.f32.mrb[0].mxu0
  %v561 = vadd.f32 %v413, %v560
  %v562 = vpop.f32.mrb[0].mxu0
  %v563 = vpop.f32.mrb[0].mxu0
  %v564 = vadd.f32 %v413, %v563
  %v565 = vpop.f32.mrb[0].mxu0
  %566 = vmatprep.mubr.bf16.mxu0 0
  %567 = vmatmul.mubr.bf16.gmra.mrb[0].mxu0 %v447
  %v568 = vpop.f32.mrb[0].mxu0
  %v569 = vadd.f32 %v413, %v568
  %v570 = vpop.f32.mrb[0].mxu0
  %v571 = vpop.f32.mrb[0].mxu0
  %v572 = vadd.f32 %v413, %v571
  %v573 = vpop.f32.mrb[0].mxu0
  %574 = vmatprep.mubr.bf16.mxu0 0
  %575 = vmatmul.mubr.bf16.gmra.mrb[0].mxu0 %v450
  %v576 = vpop.f32.mrb[0].mxu0
  %v577 = vadd.f32 %v413, %v576
  %v578 = vpop.f32.mrb[0].mxu0
  %v579 = vpop.f32.mrb[0].mxu0
  %v580 = vadd.f32 %v413, %v579
  %v581 = vpop.f32.mrb[0].mxu0
  %582 = vmatprep.mubr.bf16.mxu0 0
  %583 = vmatmul.mubr.bf16.gmra.mrb[0].mxu0 %v453
  %v584 = vpop.f32.mrb[0].mxu0
  %v585 = vadd.f32 %v413, %v584
  %v586 = vpop.f32.mrb[0].mxu0
  %v587 = vpop.f32.mrb[0].mxu0
  %v588 = vadd.f32 %v413, %v587
  %v589 = vpop.f32.mrb[0].mxu0
  %590 = vmatprep.mubr.bf16.mxu0 0
  %591 = vmatmul.mubr.bf16.gmra.mrb[0].mxu0 %v456
  %v592 = vpop.f32.mrb[0].mxu0
  %v593 = vadd.f32 %v413, %v592
  %v594 = vpop.f32.mrb[0].mxu0
  %v595 = vpop.f32.mrb[0].mxu0
  %v596 = vadd.f32 %v413, %v595
  %v597 = vpop.f32.mrb[0].mxu0
  %598 = vmatprep.mubr.bf16.mxu0 0
  %599 = vmatmul.mubr.bf16.gmra.mrb[0].mxu0 %v459
  %v600 = vpop.f32.mrb[0].mxu0
  %v601 = vadd.f32 %v413, %v600
  %v602 = vpop.f32.mrb[0].mxu0
  %v603 = vpop.f32.mrb[0].mxu0
  %v604 = vadd.f32 %v413, %v603
  %v605 = vpop.f32.mrb[0].mxu0
  %606 = vmatprep.mubr.bf16.mxu0 0
  %607 = vmatmul.mubr.bf16.gmra.mrb[0].mxu0 %v462
  %v608 = vpop.f32.mrb[0].mxu0
  %v609 = vadd.f32 %v413, %v608
  %v610 = vpop.f32.mrb[0].mxu0
  %v611 = vpop.f32.mrb[0].mxu0
  %v612 = vadd.f32 %v413, %v611
  %v613 = vpop.f32.mrb[0].mxu0
  %614 = vmatprep.mubr.bf16.mxu0 0
  %615 = vmatmul.mubr.bf16.gmra.mrb[0].mxu0 %v465
  %v616 = vpop.f32.mrb[0].mxu0
  %v617 = vadd.f32 %v413, %v616
  %v618 = vpop.f32.mrb[0].mxu0
  %v619 = vpop.f32.mrb[0].mxu0
  %v620 = vadd.f32 %v413, %v619
  %v621 = vpop.f32.mrb[0].mxu0
  %622 = vmatprep.mubr.bf16.mxu0 0
  %623 = vmatmul.mubr.bf16.gmra.mrb[0].mxu0 %v468
  %v624 = vpop.f32.mrb[0].mxu0
  %v625 = vadd.f32 %v413, %v624
  %v626 = vpop.f32.mrb[0].mxu0
  %v627 = vpop.f32.mrb[0].mxu0
  %v628 = vadd.f32 %v413, %v627
  %v629 = vpop.f32.mrb[0].mxu0
  %630 = vdwg.mxu0
  %v631 = vmax.f32 %v505, 0.0
  %v632 = vmax.f32 %v508, 0.0
  %v633 = vmax.f32 %v513, 0.0
  %v634 = vmax.f32 %v516, 0.0
  %v635 = vmax.f32 %v521, 0.0
  %v636 = vmax.f32 %v524, 0.0
  %v637 = vmax.f32 %v529, 0.0
  %v638 = vmax.f32 %v532, 0.0
  %v639 = vmax.f32 %v537, 0.0
  %v640 = vmax.f32 %v540, 0.0
  %v641 = vmax.f32 %v545, 0.0
  %v642 = vmax.f32 %v548, 0.0
  %v643 = vmax.f32 %v553, 0.0
  %v644 = vmax.f32 %v556, 0.0
  %v645 = vmax.f32 %v561, 0.0
  %v646 = vmax.f32 %v564, 0.0
  %v647 = vmax.f32 %v569, 0.0
  %v648 = vmax.f32 %v572, 0.0
  %v649 = vmax.f32 %v577, 0.0
  %v650 = vmax.f32 %v580, 0.0
  %v651 = vmax.f32 %v585, 0.0
  %v652 = vmax.f32 %v588, 0.0
  %v653 = vmax.f32 %v593, 0.0
  %v654 = vmax.f32 %v596, 0.0
  %v655 = vmax.f32 %v601, 0.0
  %v656 = vmax.f32 %v604, 0.0
  %v657 = vmax.f32 %v609, 0.0
  %v658 = vmax.f32 %v612, 0.0
  %v659 = vmax.f32 %v617, 0.0
  %v660 = vmax.f32 %v620, 0.0
  %v661 = vmax.f32 %v625, 0.0
  %v662 = vmax.f32 %v628, 0.0
  %v663 = vrot.slane %v631, 4
  %v664 = vmax.f32 %v631, %v663
  %v665 = vrot.slane %v664, 2
  %v666 = vmax.f32 %v664, %v665
  %v667 = vrot.slane %v666, 1
  %v668 = vmax.f32 %v666, %v667
  %v669 = vrot.slane %v632, 4
  %v670 = vmax.f32 %v632, %v669
  %v671 = vrot.slane %v670, 2
  %v672 = vmax.f32 %v670, %v671
  %v673 = vrot.slane %v672, 1
  %v674 = vmax.f32 %v672, %v673
  %v675 = vrot.slane %v633, 4
  %v676 = vmax.f32 %v633, %v675
  %v677 = vrot.slane %v676, 2
  %v678 = vmax.f32 %v676, %v677
  %v679 = vrot.slane %v678, 1
  %v680 = vmax.f32 %v678, %v679
  %v681 = vrot.slane %v634, 4
  %v682 = vmax.f32 %v634, %v681
  %v683 = vrot.slane %v682, 2
  %v684 = vmax.f32 %v682, %v683
  %v685 = vrot.slane %v684, 1
  %v686 = vmax.f32 %v684, %v685
  %v687 = vrot.slane %v635, 4
  %v688 = vmax.f32 %v635, %v687
  %v689 = vrot.slane %v688, 2
  %v690 = vmax.f32 %v688, %v689
  %v691 = vrot.slane %v690, 1
  %v692 = vmax.f32 %v690, %v691
  %v693 = vrot.slane %v636, 4
  %v694 = vmax.f32 %v636, %v693
  %v695 = vrot.slane %v694, 2
  %v696 = vmax.f32 %v694, %v695
  %v697 = vrot.slane %v696, 1
  %v698 = vmax.f32 %v696, %v697
  %v699 = vrot.slane %v637, 4
  %v700 = vmax.f32 %v637, %v699
  %v701 = vrot.slane %v700, 2
  %v702 = vmax.f32 %v700, %v701
  %v703 = vrot.slane %v702, 1
  %v704 = vmax.f32 %v702, %v703
  %v705 = vrot.slane %v638, 4
  %v706 = vmax.f32 %v638, %v705
  %v707 = vrot.slane %v706, 2
  %v708 = vmax.f32 %v706, %v707
  %v709 = vrot.slane %v708, 1
  %v710 = vmax.f32 %v708, %v709
  %v711 = vrot.slane %v639, 4
  %v712 = vmax.f32 %v639, %v711
  %v713 = vrot.slane %v712, 2
  %v714 = vmax.f32 %v712, %v713
  %v715 = vrot.slane %v714, 1
  %v716 = vmax.f32 %v714, %v715
  %v717 = vrot.slane %v640, 4
  %v718 = vmax.f32 %v640, %v717
  %v719 = vrot.slane %v718, 2
  %v720 = vmax.f32 %v718, %v719
  %v721 = vrot.slane %v720, 1
  %v722 = vmax.f32 %v720, %v721
  %v723 = vrot.slane %v641, 4
  %v724 = vmax.f32 %v641, %v723
  %v725 = vrot.slane %v724, 2
  %v726 = vmax.f32 %v724, %v725
  %v727 = vrot.slane %v726, 1
  %v728 = vmax.f32 %v726, %v727
  %v729 = vrot.slane %v642, 4
  %v730 = vmax.f32 %v642, %v729
  %v731 = vrot.slane %v730, 2
  %v732 = vmax.f32 %v730, %v731
  %v733 = vrot.slane %v732, 1
  %v734 = vmax.f32 %v732, %v733
  %v735 = vrot.slane %v643, 4
  %v736 = vmax.f32 %v643, %v735
  %v737 = vrot.slane %v736, 2
  %v738 = vmax.f32 %v736, %v737
  %v739 = vrot.slane %v738, 1
  %v740 = vmax.f32 %v738, %v739
  %v741 = vrot.slane %v644, 4
  %v742 = vmax.f32 %v644, %v741
  %v743 = vrot.slane %v742, 2
  %v744 = vmax.f32 %v742, %v743
  %v745 = vrot.slane %v744, 1
  %v746 = vmax.f32 %v744, %v745
  %v747 = vrot.slane %v645, 4
  %v748 = vmax.f32 %v645, %v747
  %v749 = vrot.slane %v748, 2
  %v750 = vmax.f32 %v748, %v749
  %v751 = vrot.slane %v750, 1
  %v752 = vmax.f32 %v750, %v751
  %v753 = vrot.slane %v646, 4
  %v754 = vmax.f32 %v646, %v753
  %v755 = vrot.slane %v754, 2
  %v756 = vmax.f32 %v754, %v755
  %v757 = vrot.slane %v756, 1
  %v758 = vmax.f32 %v756, %v757
  %v759 = vrot.slane %v647, 4
  %v760 = vmax.f32 %v647, %v759
  %v761 = vrot.slane %v760, 2
  %v762 = vmax.f32 %v760, %v761
  %v763 = vrot.slane %v762, 1
  %v764 = vmax.f32 %v762, %v763
  %v765 = vrot.slane %v648, 4
  %v766 = vmax.f32 %v648, %v765
  %v767 = vrot.slane %v766, 2
  %v768 = vmax.f32 %v766, %v767
  %v769 = vrot.slane %v768, 1
  %v770 = vmax.f32 %v768, %v769
  %v771 = vrot.slane %v649, 4
  %v772 = vmax.f32 %v649, %v771
  %v773 = vrot.slane %v772, 2
  %v774 = vmax.f32 %v772, %v773
  %v775 = vrot.slane %v774, 1
  %v776 = vmax.f32 %v774, %v775
  %v777 = vrot.slane %v650, 4
  %v778 = vmax.f32 %v650, %v777
  %v779 = vrot.slane %v778, 2
  %v780 = vmax.f32 %v778, %v779
  %v781 = vrot.slane %v780, 1
  %v782 = vmax.f32 %v780, %v781
  %v783 = vrot.slane %v651, 4
  %v784 = vmax.f32 %v651, %v783
  %v785 = vrot.slane %v784, 2
  %v786 = vmax.f32 %v784, %v785
  %v787 = vrot.slane %v786, 1
  %v788 = vmax.f32 %v786, %v787
  %v789 = vrot.slane %v652, 4
  %v790 = vmax.f32 %v652, %v789
  %v791 = vrot.slane %v790, 2
  %v792 = vmax.f32 %v790, %v791
  %v793 = vrot.slane %v792, 1
  %v794 = vmax.f32 %v792, %v793
  %v795 = vrot.slane %v653, 4
  %v796 = vmax.f32 %v653, %v795
  %v797 = vrot.slane %v796, 2
  %v798 = vmax.f32 %v796, %v797
  %v799 = vrot.slane %v798, 1
  %v800 = vmax.f32 %v798, %v799
  %v801 = vrot.slane %v654, 4
  %v802 = vmax.f32 %v654, %v801
  %v803 = vrot.slane %v802, 2
  %v804 = vmax.f32 %v802, %v803
  %v805 = vrot.slane %v804, 1
  %v806 = vmax.f32 %v804, %v805
  %v807 = vrot.slane %v655, 4
  %v808 = vmax.f32 %v655, %v807
  %v809 = vrot.slane %v808, 2
  %v810 = vmax.f32 %v808, %v809
  %v811 = vrot.slane %v810, 1
  %v812 = vmax.f32 %v810, %v811
  %v813 = vrot.slane %v656, 4
  %v814 = vmax.f32 %v656, %v813
  %v815 = vrot.slane %v814, 2
  %v816 = vmax.f32 %v814, %v815
  %v817 = vrot.slane %v816, 1
  %v818 = vmax.f32 %v816, %v817
  %v819 = vrot.slane %v657, 4
  %v820 = vmax.f32 %v657, %v819
  %v821 = vrot.slane %v820, 2
  %v822 = vmax.f32 %v820, %v821
  %v823 = vrot.slane %v822, 1
  %v824 = vmax.f32 %v822, %v823
  %v825 = vrot.slane %v658, 4
  %v826 = vmax.f32 %v658, %v825
  %v827 = vrot.slane %v826, 2
  %v828 = vmax.f32 %v826, %v827
  %v829 = vrot.slane %v828, 1
  %v830 = vmax.f32 %v828, %v829
  %v831 = vrot.slane %v659, 4
  %v832 = vmax.f32 %v659, %v831
  %v833 = vrot.slane %v832, 2
  %v834 = vmax.f32 %v832, %v833
  %v835 = vrot.slane %v834, 1
  %v836 = vmax.f32 %v834, %v835
  %v837 = vrot.slane %v660, 4
  %v838 = vmax.f32 %v660, %v837
  %v839 = vrot.slane %v838, 2
  %v840 = vmax.f32 %v838, %v839
  %v841 = vrot.slane %v840, 1
  %v842 = vmax.f32 %v840, %v841
  %v843 = vrot.slane %v661, 4
  %v844 = vmax.f32 %v661, %v843
  %v845 = vrot.slane %v844, 2
  %v846 = vmax.f32 %v844, %v845
  %v847 = vrot.slane %v846, 1
  %v848 = vmax.f32 %v846, %v847
  %v849 = vrot.slane %v662, 4
  %v850 = vmax.f32 %v662, %v849
  %v851 = vrot.slane %v850, 2
  %v852 = vmax.f32 %v850, %v851
  %v853 = vrot.slane %v852, 1
  %v854 = vmax.f32 %v852, %v853
  %vm887 = vcmask 1041409
  %v888 = vsel %vm887, %v674, %v668
  %vm889 = vcmask 1042434
  %v890 = vsel %vm889, %v680, %v888
  %vm891 = vcmask 1043459
  %v892 = vsel %vm891, %v686, %v890
  %vm893 = vcmask 1044484
  %v894 = vsel %vm893, %v692, %v892
  %vm895 = vcmask 1045509
  %v896 = vsel %vm895, %v698, %v894
  %vm897 = vcmask 1046534
  %v898 = vsel %vm897, %v704, %v896
  %vm899 = vcmask 1047559
  %v900 = vsel %vm899, %v710, %v898
  %v901 = vsel %vm887, %v722, %v716
  %v902 = vsel %vm889, %v728, %v901
  %v903 = vsel %vm891, %v734, %v902
  %v904 = vsel %vm893, %v740, %v903
  %v905 = vsel %vm895, %v746, %v904
  %v906 = vsel %vm897, %v752, %v905
  %v907 = vsel %vm899, %v758, %v906
  %v908 = vsel %vm887, %v770, %v764
  %v909 = vsel %vm889, %v776, %v908
  %v910 = vsel %vm891, %v782, %v909
  %v911 = vsel %vm893, %v788, %v910
  %v912 = vsel %vm895, %v794, %v911
  %v913 = vsel %vm897, %v800, %v912
  %v914 = vsel %vm899, %v806, %v913
  %v915 = vsel %vm887, %v818, %v812
  %v916 = vsel %vm889, %v824, %v915
  %v917 = vsel %vm891, %v830, %v916
  %v918 = vsel %vm893, %v836, %v917
  %v919 = vsel %vm895, %v842, %v918
  %v920 = vsel %vm897, %v848, %v919
  %v921 = vsel %vm899, %v854, %v920
  %926 = vst [vmem:[%s5] sm:$0xff] %v900
  %927 = vst [vmem:[%s5 + $0x8] sm:$0xff] %v907
  %928 = vst [vmem:[%s5 + $0x10] sm:$0xff] %v914
  %929 = vst [vmem:[%s5 + $0x18] sm:$0xff] %v921
  // Predicated region
  $region22: #{pointnet_sa_msg_forward.2} parent=0 // pred_check
    _
  $region23: #{pointnet_sa_msg_forward.2} parent=0 // pred_check_branch
    %931 = sbr.rel (0) target = $region25
  $region24: #{pointnet_sa_msg_forward.2} parent=0 // pred_region
    _
  $region25: #{pointnet_sa_msg_forward.2} parent=0 // pred_fallthru
    _
  // Predicated region
  $region26: #{pointnet_sa_msg_forward.2} parent=0 // pred_check
    _
  $region27: #{pointnet_sa_msg_forward.2} parent=0 // pred_check_branch
    %933 = sbr.rel (0) target = $region29
  $region28: #{pointnet_sa_msg_forward.2} parent=0 // pred_region
    _
  $region29: #{pointnet_sa_msg_forward.2} parent=0 // pred_fallthru
    _

</llo_original>
